<compile_context>
chip_gen: v5e
topology: v5e:2x2
jax: 0.10.0
libtpu: 0.0.40
codegen_flags: <defaults>
</compile_context>

<pallas_src>
import functools

import jax
import jax.numpy as jnp
from jax.experimental import pallas as pl
from jax.experimental.pallas import tpu as pltpu

BN_EPS = 1e-5
# hidden sizes from the PyTorch module
H1, H2, H3, H4, H5 = 256, 256, 128, 64, 32
OUT_LANES = 128  # packed output slab width (lane 0 = logit, 1..32 = features)


# --------------------------------------------------------------------------- #
# Kernel
# --------------------------------------------------------------------------- #
def _kernel(x_ref, w1, w2, w3, w4, w5, tp_ref, out_ref):
    tp = tp_ref[...]  # (8, 256) f32: rows 0..4 = folded shifts, 5 = wo, 6 = bo

    def dense_relu(h, w_ref, t):
        # bf16 MXU inputs, f32 accumulation; shift add + relu in f32 on the VPU.
        y = jnp.dot(h.astype(jnp.bfloat16), w_ref[...],
                    preferred_element_type=jnp.float32) + t
        return jnp.maximum(y, 0.0)

    x = x_ref[...]                                        # (tb, D) bf16
    h1 = dense_relu(x, w1, tp[0:1, :H1])                  # dense1+bn1+relu
    # dropout1/2: identity in eval mode.
    # NOTE: h1 stays live across the 256x256 matmul for the residual add; at
    # tb >= 256 it exceeds the vreg file and spills to VMEM (accepted — the
    # kernel is overhead-bound, not ld/st-bound).
    h = h1 + dense_relu(h1, w2, tp[1:2, :H2])             # dense2+bn2+relu + residual
    h = dense_relu(h, w3, tp[2:3, :H3])                   # dense3+bn3+relu
    h = dense_relu(h, w4, tp[3:4, :H4])                   # dense4+bn4+relu
    feats = dense_relu(h, w5, tp[4:5, :H5])               # dense5+bn5+relu -> features

    # Output head: N=1 matmul replaced by VPU mul + XLU lane reduction.
    wo = tp[5:6, :H5]                                     # (1, 32)
    bo = tp[6:7, 0:1]                                     # (1, 1)
    logits = jnp.sum(feats * wo, axis=-1, keepdims=True) + bo   # (tb, 1)

    # Sign-stable sigmoid on the EUP: exp(-|z|) never overflows.
    e = jnp.exp(-jnp.abs(logits))
    p = pl.reciprocal(1.0 + e, approx=True)
    sig = jnp.where(logits >= 0.0, p, 1.0 - p)            # (tb, 1)

    # Lane-pack into one dense 128-wide slab -> unmasked vst.
    pad = jnp.zeros((sig.shape[0], OUT_LANES - 1 - H5), jnp.float32)
    out_ref[...] = jnp.concatenate([sig, feats, pad], axis=-1)


# --------------------------------------------------------------------------- #
# Parameters
# --------------------------------------------------------------------------- #
def make_params(input_dim, key):
    """Deterministic synthetic parameters (PyTorch-ish uniform init + BN stats)."""
    dims = [(input_dim, H1), (H1, H2), (H2, H3), (H3, H4), (H4, H5), (H5, 1)]
    params = {}
    keys = jax.random.split(key, 4 * len(dims))
    ki = iter(keys)
    for li, (fan_in, fan_out) in enumerate(dims, start=1):
        bound = 1.0 / jnp.sqrt(jnp.float32(fan_in))
        params[f"w{li}"] = jax.random.uniform(
            next(ki), (fan_in, fan_out), jnp.float32, -bound, bound)
        params[f"b{li}"] = jax.random.uniform(
            next(ki), (1, fan_out), jnp.float32, -bound, bound)
        if li <= 5:  # BatchNorm params for layers 1..5
            params[f"gamma{li}"] = 1.0 + 0.1 * jax.random.normal(
                next(ki), (1, fan_out), jnp.float32)
            params[f"beta{li}"] = 0.1 * jax.random.normal(
                next(ki), (1, fan_out), jnp.float32)
            params[f"mean{li}"] = jnp.zeros((1, fan_out), jnp.float32)
            params[f"var{li}"] = jnp.ones((1, fan_out), jnp.float32)
        else:
            next(ki)
            next(ki)
    return params


def fold_params(params):
    """Fold inference-mode BN into the weights and pack the small vectors.

       BN(Wx+b) = (Wx+b)*s + t  with s = gamma/sqrt(var+eps), t = beta - mean*s
                = x @ (W*s) + (b*s + t)

       Weights -> bf16 (MXU inputs).  The five folded shifts, the output-head
       weight row and its bias are packed into a single (8, 256) f32 slab.
    """
    folded = {}
    slab = jnp.zeros((8, 256), jnp.float32)
    widths = (H1, H2, H3, H4, H5)
    for li, width in zip(range(1, 6), widths):
        s = params[f"gamma{li}"] / jnp.sqrt(params[f"var{li}"] + BN_EPS)
        t = params[f"beta{li}"] - params[f"mean{li}"] * s
        folded[f"w{li}"] = (params[f"w{li}"] * s).astype(jnp.bfloat16)
        shift = (params[f"b{li}"] * s + t).reshape(-1)
        slab = slab.at[li - 1, :width].set(shift)
    slab = slab.at[5, :H5].set(params["w6"].reshape(-1))   # head weight row
    slab = slab.at[6, 0].set(params["b6"][0, 0])            # head bias
    folded["tslab"] = slab
    return folded


# --------------------------------------------------------------------------- #
# Wrapper
# --------------------------------------------------------------------------- #
def _tc_per_chip():
    """Best-effort TensorCore-per-chip count (v7x/v4/v5p are dual-core)."""
    try:
        kind = jax.devices()[0].device_kind.lower()
        if ("v7" in kind) or ("v4" in kind) or ("v5p" in kind):
            return 2
    except Exception:
        pass
    return 1


def _round_up8(n):
    return max(8, ((n + 7) // 8) * 8)


def _choose_tile_b(B, num_tc):
    """Single-TC: one big tile (amortize per-step overhead).
       Dual-TC: >= 2 grid steps per TensorCore so the x DMA pipelines."""
    B8 = _round_up8(B)
    if num_tc <= 1:
        return min(B8, 1024)
    target_steps = 2 * num_tc
    tb = _round_up8(-(-B8 // target_steps))  # ceil then sublane-align
    return min(tb, 1024)


@functools.partial(jax.jit, static_argnames=("return_features", "tile_b"))
def _forward_impl(x, folded, return_features, tile_b):
    B, D = x.shape
    tb = tile_b
    Bp = pl.cdiv(B, tb) * tb

    xp = x.astype(jnp.bfloat16)                 # halve x DMA bytes
    if Bp != B:
        xp = jnp.pad(xp, ((0, Bp - B), (0, 0)))

    full = lambda i: (0, 0)     # grid-invariant weight / slab blocks
    batch = lambda i: (i, 0)    # batch-tiled blocks

    in_specs = [pl.BlockSpec((tb, D), batch)]
    inputs = [xp]
    for li in range(1, 6):
        w = folded[f"w{li}"]
        in_specs.append(pl.BlockSpec(w.shape, full))
        inputs.append(w)
    in_specs.append(pl.BlockSpec(folded["tslab"].shape, full))
    inputs.append(folded["tslab"])

    # Advisory cost hint so XLA can overlap this small custom call.
    flops = 2 * Bp * (D * H1 + H1 * H2 + H2 * H3 + H3 * H4 + H4 * H5 + H5)
    bytes_accessed = (
        Bp * D * 2                                              # x (bf16)
        + sum(int(folded[f"w{li}"].size) for li in range(1, 6)) * 2
        + int(folded["tslab"].size) * 4
        + Bp * OUT_LANES * 4                                    # packed output
    )
    cost = pl.CostEstimate(flops=flops, transcendentals=2 * Bp,
                           bytes_accessed=bytes_accessed)

    slab = pl.pallas_call(
        _kernel,
        grid=(Bp // tb,),
        in_specs=in_specs,
        out_specs=pl.BlockSpec((tb, OUT_LANES), batch),
        out_shape=jax.ShapeDtypeStruct((Bp, OUT_LANES), jnp.float32),
        compiler_params=pltpu.CompilerParams(
            dimension_semantics=("parallel",)),
        cost_estimate=cost,
    )(*inputs)

    out = slab[:B, 0:1]
    if return_features:
        return out, slab[:B, 1:1 + H5]
    return out


def resnet_forward(x, folded, return_features=False, tile_b=None):
    if tile_b is None:
        tile_b = _choose_tile_b(x.shape[0], _tc_per_chip())
    return _forward_impl(x, folded, return_features, tile_b)


# --------------------------------------------------------------------------- #
# Plain-JAX reference (same folded / bf16 math path)
# --------------------------------------------------------------------------- #
def reference_forward(x, folded):
    slab = folded["tslab"]
    widths = (H1, H2, H3, H4, H5)

    def blk(h, li):
        w = folded[f"w{li}"]
        y = jnp.dot(h.astype(jnp.bfloat16), w,
                    preferred_element_type=jnp.float32) + slab[li - 1, :widths[li - 1]]
        return jnp.maximum(y, 0.0)

    h1 = blk(x, 1)
    h = h1 + blk(h1, 2)
    h = blk(h, 3)
    h = blk(h, 4)
    feats = blk(h, 5)
    logits = feats @ slab[5, :H5].reshape(H5, 1) + slab[6, 0]
    return jax.nn.sigmoid(logits), feats


# --------------------------------------------------------------------------- #
if __name__ == "__main__":
    key = jax.random.PRNGKey(0)
    k_x, k_p = jax.random.split(key)

    B, INPUT_DIM = 256, 32
    x = jax.random.normal(k_x, (B, INPUT_DIM), jnp.float32)
    params = make_params(INPUT_DIM, k_p)
    folded = fold_params(params)

    # Common path (logit only) and feature path share the same packed-slab kernel.
    out = jax.block_until_ready(resnet_forward(x, folded))
    out_f, feat = resnet_forward(x, folded, return_features=True)
    out_f = jax.block_until_ready(out_f)
    feat = jax.block_until_ready(feat)

    ref_out, ref_feat = reference_forward(x, folded)

    assert out.shape == (B, 1) and out_f.shape == (B, 1) and feat.shape == (B, H5)
    # bf16 matmul path on both sides; loose-ish tolerances cover accumulation
    # order differences and the EUP approximate reciprocal in the sigmoid.
    assert jnp.allclose(feat, ref_feat, atol=2e-2, rtol=1e-2)
    assert jnp.allclose(out, ref_out, atol=5e-3, rtol=0)
    assert jnp.allclose(out_f, ref_out, atol=5e-3, rtol=0)

    print("KERNEL_OK")
</pallas_src>

<mosaic_0001>
module attributes {stable_mosaic.version = 11 : i64} {
  func.func @_kernel(%arg0: i32, %arg1: memref<256x32xbf16, #tpu.memory_space<vmem>>, %arg2: memref<32x256xbf16, #tpu.memory_space<vmem>>, %arg3: memref<256x256xbf16, #tpu.memory_space<vmem>>, %arg4: memref<256x128xbf16, #tpu.memory_space<vmem>>, %arg5: memref<128x64xbf16, #tpu.memory_space<vmem>>, %arg6: memref<64x32xbf16, #tpu.memory_space<vmem>>, %arg7: memref<8x256xf32, #tpu.memory_space<vmem>>, %arg8: memref<256x128xf32, #tpu.memory_space<vmem>>) attributes {dimension_semantics = [#tpu.dimension_semantics<parallel>], iteration_bounds = array<i64: 1>, scalar_prefetch = 0 : i64, scratch_operands = 0 : i64, tpu.core_type = #tpu.core_type<tc>, window_params = [{transform_indices = @transform_0, window_bounds = array<i64: 256, 32>}, {pipeline_mode = #tpu.pipeline_mode<synchronous>, transform_indices = @transform_1, window_bounds = array<i64: 32, 256>}, {pipeline_mode = #tpu.pipeline_mode<synchronous>, transform_indices = @transform_2, window_bounds = array<i64: 256, 256>}, {pipeline_mode = #tpu.pipeline_mode<synchronous>, transform_indices = @transform_3, window_bounds = array<i64: 256, 128>}, {pipeline_mode = #tpu.pipeline_mode<synchronous>, transform_indices = @transform_4, window_bounds = array<i64: 128, 64>}, {pipeline_mode = #tpu.pipeline_mode<synchronous>, transform_indices = @transform_5, window_bounds = array<i64: 64, 32>}, {pipeline_mode = #tpu.pipeline_mode<synchronous>, transform_indices = @transform_6, window_bounds = array<i64: 8, 256>}, {transform_indices = @transform_7, window_bounds = array<i64: 256, 128>}]} {
    %c0 = arith.constant 0 : index
    %c0_0 = arith.constant 0 : index
    %0 = vector.load %arg7[%c0, %c0_0] : memref<8x256xf32, #tpu.memory_space<vmem>>, vector<8x256xf32>
    %c0_1 = arith.constant 0 : index
    %c0_2 = arith.constant 0 : index
    %1 = vector.load %arg1[%c0_1, %c0_2] : memref<256x32xbf16, #tpu.memory_space<vmem>>, vector<256x32xbf16>
    %2 = vector.extract_strided_slice %0 {offsets = [0, 0], sizes = [1, 256], strides = [1, 1]} : vector<8x256xf32> to vector<1x256xf32>
    %c0_3 = arith.constant 0 : index
    %c0_4 = arith.constant 0 : index
    %3 = vector.load %arg2[%c0_3, %c0_4] : memref<32x256xbf16, #tpu.memory_space<vmem>>, vector<32x256xbf16>
    %cst = arith.constant dense<0.000000e+00> : vector<256x256xf32>
    %4 = tpu.matmul %1, %3, %cst {dimension_numbers = #tpu.dot_dimension_numbers<[1], [0], [0], [1], [0, 0, 1, 1], [], []>} : vector<256x32xbf16>, vector<32x256xbf16>, vector<256x256xf32> -> vector<256x256xf32>
    %5 = vector.broadcast %2 : vector<1x256xf32> to vector<256x256xf32>
    %6 = arith.addf %4, %5 : vector<256x256xf32>
    %cst_5 = arith.constant 0.000000e+00 : f32
    %7 = vector.broadcast %cst_5 : f32 to vector<256x256xf32>
    %8 = arith.maximumf %6, %7 : vector<256x256xf32>
    %9 = vector.extract_strided_slice %0 {offsets = [1, 0], sizes = [1, 256], strides = [1, 1]} : vector<8x256xf32> to vector<1x256xf32>
    %10 = arith.truncf %8 : vector<256x256xf32> to vector<256x256xbf16>
    %c0_6 = arith.constant 0 : index
    %c0_7 = arith.constant 0 : index
    %11 = vector.load %arg3[%c0_6, %c0_7] : memref<256x256xbf16, #tpu.memory_space<vmem>>, vector<256x256xbf16>
    %cst_8 = arith.constant dense<0.000000e+00> : vector<256x256xf32>
    %12 = tpu.matmul %10, %11, %cst_8 {dimension_numbers = #tpu.dot_dimension_numbers<[1], [0], [0], [1], [0, 0, 1, 1], [], []>} : vector<256x256xbf16>, vector<256x256xbf16>, vector<256x256xf32> -> vector<256x256xf32>
    %13 = vector.broadcast %9 : vector<1x256xf32> to vector<256x256xf32>
    %14 = arith.addf %12, %13 : vector<256x256xf32>
    %cst_9 = arith.constant 0.000000e+00 : f32
    %15 = vector.broadcast %cst_9 : f32 to vector<256x256xf32>
    %16 = arith.maximumf %14, %15 : vector<256x256xf32>
    %17 = arith.addf %8, %16 : vector<256x256xf32>
    %18 = vector.extract_strided_slice %0 {offsets = [2, 0], sizes = [1, 128], strides = [1, 1]} : vector<8x256xf32> to vector<1x128xf32>
    %19 = arith.truncf %17 : vector<256x256xf32> to vector<256x256xbf16>
    %c0_10 = arith.constant 0 : index
    %c0_11 = arith.constant 0 : index
    %20 = vector.load %arg4[%c0_10, %c0_11] : memref<256x128xbf16, #tpu.memory_space<vmem>>, vector<256x128xbf16>
    %cst_12 = arith.constant dense<0.000000e+00> : vector<256x128xf32>
    %21 = tpu.matmul %19, %20, %cst_12 {dimension_numbers = #tpu.dot_dimension_numbers<[1], [0], [0], [1], [0, 0, 1, 1], [], []>} : vector<256x256xbf16>, vector<256x128xbf16>, vector<256x128xf32> -> vector<256x128xf32>
    %22 = vector.broadcast %18 : vector<1x128xf32> to vector<256x128xf32>
    %23 = arith.addf %21, %22 : vector<256x128xf32>
    %cst_13 = arith.constant 0.000000e+00 : f32
    %24 = vector.broadcast %cst_13 : f32 to vector<256x128xf32>
    %25 = arith.maximumf %23, %24 : vector<256x128xf32>
    %26 = vector.extract_strided_slice %0 {offsets = [3, 0], sizes = [1, 64], strides = [1, 1]} : vector<8x256xf32> to vector<1x64xf32>
    %27 = arith.truncf %25 : vector<256x128xf32> to vector<256x128xbf16>
    %c0_14 = arith.constant 0 : index
    %c0_15 = arith.constant 0 : index
    %28 = vector.load %arg5[%c0_14, %c0_15] : memref<128x64xbf16, #tpu.memory_space<vmem>>, vector<128x64xbf16>
    %cst_16 = arith.constant dense<0.000000e+00> : vector<256x64xf32>
    %29 = tpu.matmul %27, %28, %cst_16 {dimension_numbers = #tpu.dot_dimension_numbers<[1], [0], [0], [1], [0, 0, 1, 1], [], []>} : vector<256x128xbf16>, vector<128x64xbf16>, vector<256x64xf32> -> vector<256x64xf32>
    %30 = vector.broadcast %26 : vector<1x64xf32> to vector<256x64xf32>
    %31 = arith.addf %29, %30 : vector<256x64xf32>
    %cst_17 = arith.constant 0.000000e+00 : f32
    %32 = vector.broadcast %cst_17 : f32 to vector<256x64xf32>
    %33 = arith.maximumf %31, %32 : vector<256x64xf32>
    %34 = vector.extract_strided_slice %0 {offsets = [4, 0], sizes = [1, 32], strides = [1, 1]} : vector<8x256xf32> to vector<1x32xf32>
    %35 = arith.truncf %33 : vector<256x64xf32> to vector<256x64xbf16>
    %c0_18 = arith.constant 0 : index
    %c0_19 = arith.constant 0 : index
    %36 = vector.load %arg6[%c0_18, %c0_19] : memref<64x32xbf16, #tpu.memory_space<vmem>>, vector<64x32xbf16>
    %cst_20 = arith.constant dense<0.000000e+00> : vector<256x32xf32>
    %37 = tpu.matmul %35, %36, %cst_20 {dimension_numbers = #tpu.dot_dimension_numbers<[1], [0], [0], [1], [0, 0, 1, 1], [], []>} : vector<256x64xbf16>, vector<64x32xbf16>, vector<256x32xf32> -> vector<256x32xf32>
    %38 = vector.broadcast %34 : vector<1x32xf32> to vector<256x32xf32>
    %39 = arith.addf %37, %38 : vector<256x32xf32>
    %cst_21 = arith.constant 0.000000e+00 : f32
    %40 = vector.broadcast %cst_21 : f32 to vector<256x32xf32>
    %41 = arith.maximumf %39, %40 : vector<256x32xf32>
    %42 = vector.extract_strided_slice %0 {offsets = [5, 0], sizes = [1, 32], strides = [1, 1]} : vector<8x256xf32> to vector<1x32xf32>
    %43 = vector.extract_strided_slice %0 {offsets = [6, 0], sizes = [1, 1], strides = [1, 1]} : vector<8x256xf32> to vector<1x1xf32>
    %44 = vector.broadcast %42 : vector<1x32xf32> to vector<256x32xf32>
    %45 = arith.mulf %41, %44 : vector<256x32xf32>
    %cst_22 = arith.constant dense<0.000000e+00> : vector<256xf32>
    %46 = vector.multi_reduction <add>, %45, %cst_22 [1] : vector<256x32xf32> to vector<256xf32>
    %47 = vector.shape_cast %46 : vector<256xf32> to vector<256x1xf32>
    %48 = vector.broadcast %43 : vector<1x1xf32> to vector<256x1xf32>
    %49 = arith.addf %47, %48 : vector<256x1xf32>
    %50 = math.absf %49 : vector<256x1xf32>
    %cst_23 = arith.constant 0.000000e+00 : f32
    %51 = vector.broadcast %cst_23 : f32 to vector<256x1xf32>
    %52 = arith.subf %51, %50 : vector<256x1xf32>
    %53 = math.exp %52 : vector<256x1xf32>
    %cst_24 = arith.constant 1.000000e+00 : f32
    %54 = vector.broadcast %cst_24 : f32 to vector<256x1xf32>
    %55 = arith.addf %54, %53 : vector<256x1xf32>
    %56 = tpu.reciprocal %55 {approx = true} : vector<256x1xf32> -> vector<256x1xf32>
    %cst_25 = arith.constant 0.000000e+00 : f32
    %57 = vector.broadcast %cst_25 : f32 to vector<256x1xf32>
    %58 = arith.cmpf oge, %49, %57 : vector<256x1xf32>
    %cst_26 = arith.constant 1.000000e+00 : f32
    %59 = vector.broadcast %cst_26 : f32 to vector<256x1xf32>
    %60 = arith.subf %59, %56 : vector<256x1xf32>
    %61 = arith.select %58, %56, %60 : vector<256x1xi1>, vector<256x1xf32>
    %cst_27 = arith.constant 0.000000e+00 : f32
    %62 = vector.broadcast %cst_27 : f32 to vector<256x95xf32>
    %63 = tpu.concatenate %61, %41, %62 in 1 : vector<256x1xf32>, vector<256x32xf32>, vector<256x95xf32> -> vector<256x128xf32>
    %c0_28 = arith.constant 0 : index
    %c0_29 = arith.constant 0 : index
    %64 = vector.load %arg8[%c0_28, %c0_29] : memref<256x128xf32, #tpu.memory_space<vmem>>, vector<256x128xf32>
    tpu.vector_store %arg8[%c0_28, %c0_29], %63 {strides = array<i32>} : memref<256x128xf32, #tpu.memory_space<vmem>>, vector<256x128xf32>,
    return
  }
  func.func @transform_0(%arg0: i32) -> (i32, i32) {
    %c0_i32 = arith.constant 0 : i32
    %c0_i32_0 = arith.constant 0 : i32
    return %arg0, %c0_i32 : i32, i32
  }
  func.func @transform_1(%arg0: i32) -> (i32, i32) {
    %c0_i32 = arith.constant 0 : i32
    %c0_i32_0 = arith.constant 0 : i32
    %c0_i32_1 = arith.constant 0 : i32
    return %c0_i32, %c0_i32_0 : i32, i32
  }
  func.func @transform_2(%arg0: i32) -> (i32, i32) {
    %c0_i32 = arith.constant 0 : i32
    %c0_i32_0 = arith.constant 0 : i32
    %c0_i32_1 = arith.constant 0 : i32
    return %c0_i32, %c0_i32_0 : i32, i32
  }
  func.func @transform_3(%arg0: i32) -> (i32, i32) {
    %c0_i32 = arith.constant 0 : i32
    %c0_i32_0 = arith.constant 0 : i32
    %c0_i32_1 = arith.constant 0 : i32
    return %c0_i32, %c0_i32_0 : i32, i32
  }
  func.func @transform_4(%arg0: i32) -> (i32, i32) {
    %c0_i32 = arith.constant 0 : i32
    %c0_i32_0 = arith.constant 0 : i32
    %c0_i32_1 = arith.constant 0 : i32
    return %c0_i32, %c0_i32_0 : i32, i32
  }
  func.func @transform_5(%arg0: i32) -> (i32, i32) {
    %c0_i32 = arith.constant 0 : i32
    %c0_i32_0 = arith.constant 0 : i32
    %c0_i32_1 = arith.constant 0 : i32
    return %c0_i32, %c0_i32_0 : i32, i32
  }
  func.func @transform_6(%arg0: i32) -> (i32, i32) {
    %c0_i32 = arith.constant 0 : i32
    %c0_i32_0 = arith.constant 0 : i32
    %c0_i32_1 = arith.constant 0 : i32
    return %c0_i32, %c0_i32_0 : i32, i32
  }
  func.func @transform_7(%arg0: i32) -> (i32, i32) {
    %c0_i32 = arith.constant 0 : i32
    %c0_i32_0 = arith.constant 0 : i32
    return %arg0, %c0_i32 : i32, i32
  }
}

</mosaic_0001>

<llo_original>
// kernel: _forward_impl.1
$region0: #{_forward_impl.1}
  #allocation0 [shape = 'u32[]', space=smem, size = 0x4, offset = 0x4, fixed_abs, tag = 'smem constant byte address 0x4 - core index']
  #allocation1 [shape = 'u32[72,128]{1,0:T(1,128)}', space=vmem, size = 0x9000, scoped, tag = 'internal scratch']
  %s0 = inlined_call_operand.vmem [shape: bf16[256,32], index: 0, kind: input, shape index: {}]
  %s1 = inlined_call_operand.hbm [shape: bf16[32,256], index: 1, kind: input, shape index: {}]
  %s2 = inlined_call_operand.vmem [shape: bf16[256,256], index: 2, kind: input, shape index: {}]
  %s3 = inlined_call_operand.vmem [shape: bf16[256,128], index: 3, kind: input, shape index: {}]
  %s4 = inlined_call_operand.vmem [shape: bf16[128,64], index: 4, kind: input, shape index: {}]
  %s5 = inlined_call_operand.vmem [shape: bf16[64,32], index: 5, kind: input, shape index: {}]
  %s6 = inlined_call_operand.vmem [shape: f32[8,256], index: 6, kind: input, shape index: {}]
  %s7 = inlined_call_operand.vmem [shape: f32[256,128], index: 7, kind: output, shape index: {}]
  %s8 = sld [smem:[#allocation0]]
  $region42: #{_forward_impl.1} parent=0
    _
  %s10 = ssub.s32 1, %s8
  %s11 = scalar_select 0, %s10, %s8
  $region1: #{_forward_impl.1} parent=0
    #allocation2 [shape = 'u8[16384]{0}', space=vmem, size = 0x4000, scoped, tag = 'input window, operand 1, single buffered']
    #allocation3 [shape = 's32[1]{0}', space=sflag, size = 0x4, scoped, tag = 'scoped memory for _forward_impl.1']
    %12 = vsyncpa [#allocation3], 0
    // Predicated region
    $region2: #{_forward_impl.1} parent=1 // pred_check
      _
    $region3: #{_forward_impl.1} parent=1 // pred_check_branch
      %14 = sbr.rel (0) target = $region5
    $region4: #{_forward_impl.1} parent=1 // pred_region
      _
    $region5: #{_forward_impl.1} parent=1 // pred_fallthru
      _
    // Predicated region
    $region6: #{_forward_impl.1} parent=1 // pred_check
      _
    $region7: #{_forward_impl.1} parent=1 // pred_check_branch
      %16 = sbr.rel (0) target = $region9
    $region8: #{_forward_impl.1} parent=1 // pred_region
      %18 = vsyncadd [#allocation3], 0
      %s19 = sshll.u32 %s1, 4
      %s20 = int_to_ptr.hbm [resolvable:$true] %s19
      %s21 = sshll.u32 [#allocation2], 4
      %s22 = int_to_ptr.vmem [resolvable:$true] %s21
      %27 = dma.hbm_to_vmem [thread:$0]  %s20, 512, %s22, [#allocation3], 128, 128, 8
    $region9: #{_forward_impl.1} parent=1 // pred_fallthru
      _
    // Predicated region
    $region10: #{_forward_impl.1} parent=1 // pred_check
      _
    $region11: #{_forward_impl.1} parent=1 // pred_check_branch
      %29 = sbr.rel (0) target = $region13
    $region12: #{_forward_impl.1} parent=1 // pred_region
      _
    $region13: #{_forward_impl.1} parent=1 // pred_fallthru
      _
    // Predicated region
    $region14: #{_forward_impl.1} parent=1 // pred_check
      _
    $region15: #{_forward_impl.1} parent=1 // pred_check_branch
      %31 = sbr.rel (0) target = $region17
    $region16: #{_forward_impl.1} parent=1 // pred_region
      _
    $region17: #{_forward_impl.1} parent=1 // pred_fallthru
      _
    // Predicated region
    $region18: #{_forward_impl.1} parent=1 // pred_check
      _
    $region19: #{_forward_impl.1} parent=1 // pred_check_branch
      %33 = sbr.rel (0) target = $region21
    $region20: #{_forward_impl.1} parent=1 // pred_region
      _
    $region21: #{_forward_impl.1} parent=1 // pred_fallthru
      _
    // Predicated region
    $region22: #{_forward_impl.1} parent=1 // pred_check
      _
    $region23: #{_forward_impl.1} parent=1 // pred_check_branch
      %35 = sbr.rel (0) target = $region25
    $region24: #{_forward_impl.1} parent=1 // pred_region
      _
    $region25: #{_forward_impl.1} parent=1 // pred_fallthru
      _
    // Predicated region
    $region26: #{_forward_impl.1} parent=1 // pred_check
      _
    $region27: #{_forward_impl.1} parent=1 // pred_check_branch
      %37 = sbr.rel (0) target = $region29
    $region28: #{_forward_impl.1} parent=1 // pred_region
      _
    $region29: #{_forward_impl.1} parent=1 // pred_fallthru
      _
    // Predicated region
    $region30: #{_forward_impl.1} parent=1 // pred_check
      _
    $region31: #{_forward_impl.1} parent=1 // pred_check_branch
      %39 = sbr.rel (0) target = $region33
    $region32: #{_forward_impl.1} parent=1 // pred_region
      %41 = dma.done [#allocation3], 512
    $region33: #{_forward_impl.1} parent=1 // pred_fallthru
      _
    %v43 = vld [vmem:[%s6] sm:$0xff]
    %v44 = vld [vmem:[%s6 + $0x8] sm:$0xff]
    %v45 = vld [vmem:[%s0] sm:$0xf]
    %v46 = vld [vmem:[%s0 + $0x4] sm:$0xf]
    %v47 = vld [vmem:[%s0 + $0x8] sm:$0xf]
    %v48 = vld [vmem:[%s0 + $0xc] sm:$0xf]
    %v49 = vld [vmem:[%s0 + $0x10] sm:$0xf]
    %v50 = vld [vmem:[%s0 + $0x14] sm:$0xf]
    %v51 = vld [vmem:[%s0 + $0x18] sm:$0xf]
    %v52 = vld [vmem:[%s0 + $0x1c] sm:$0xf]
    %v53 = vld [vmem:[%s0 + $0x20] sm:$0xf]
    %v54 = vld [vmem:[%s0 + $0x24] sm:$0xf]
    %v55 = vld [vmem:[%s0 + $0x28] sm:$0xf]
    %v56 = vld [vmem:[%s0 + $0x2c] sm:$0xf]
    %v57 = vld [vmem:[%s0 + $0x30] sm:$0xf]
    %v58 = vld [vmem:[%s0 + $0x34] sm:$0xf]
    %v59 = vld [vmem:[%s0 + $0x38] sm:$0xf]
    %v60 = vld [vmem:[%s0 + $0x3c] sm:$0xf]
    %v61 = vld [vmem:[%s0 + $0x40] sm:$0xf]
    %v62 = vld [vmem:[%s0 + $0x44] sm:$0xf]
    %v63 = vld [vmem:[%s0 + $0x48] sm:$0xf]
    %v64 = vld [vmem:[%s0 + $0x4c] sm:$0xf]
    %v65 = vld [vmem:[%s0 + $0x50] sm:$0xf]
    %v66 = vld [vmem:[%s0 + $0x54] sm:$0xf]
    %v67 = vld [vmem:[%s0 + $0x58] sm:$0xf]
    %v68 = vld [vmem:[%s0 + $0x5c] sm:$0xf]
    %v69 = vld [vmem:[%s0 + $0x60] sm:$0xf]
    %v70 = vld [vmem:[%s0 + $0x64] sm:$0xf]
    %v71 = vld [vmem:[%s0 + $0x68] sm:$0xf]
    %v72 = vld [vmem:[%s0 + $0x6c] sm:$0xf]
    %v73 = vld [vmem:[%s0 + $0x70] sm:$0xf]
    %v74 = vld [vmem:[%s0 + $0x74] sm:$0xf]
    %v75 = vld [vmem:[%s0 + $0x78] sm:$0xf]
    %v76 = vld [vmem:[%s0 + $0x7c] sm:$0xf]
    %v77 = vld [vmem:[#allocation2] sm:$0xff]
    %v78 = vld [vmem:[#allocation2 + $0x8] sm:$0xff]
    %v79 = vld [vmem:[#allocation2 + $0x10] sm:$0xff]
    %v80 = vld [vmem:[#allocation2 + $0x18] sm:$0xff]
    %v81 = vperm.slane %v43, 0
    %v82 = vperm.slane %v44, 0
    %v115 = vunpack.c.l.b16 %v45
    %v116 = vunpack.c.l.b16 %v46
    %v117 = vunpack.c.l.b16 %v47
    %v118 = vunpack.c.l.b16 %v48
    %v119 = vunpack.c.l.b16 %v49
    %v120 = vunpack.c.l.b16 %v50
    %v121 = vunpack.c.l.b16 %v51
    %v122 = vunpack.c.l.b16 %v52
    %v123 = vunpack.c.l.b16 %v53
    %v124 = vunpack.c.l.b16 %v54
    %v125 = vunpack.c.l.b16 %v55
    %v126 = vunpack.c.l.b16 %v56
    %v127 = vunpack.c.l.b16 %v57
    %v128 = vunpack.c.l.b16 %v58
    %v129 = vunpack.c.l.b16 %v59
    %v130 = vunpack.c.l.b16 %v60
    %v131 = vunpack.c.l.b16 %v61
    %v132 = vunpack.c.l.b16 %v62
    %v133 = vunpack.c.l.b16 %v63
    %v134 = vunpack.c.l.b16 %v64
    %v135 = vunpack.c.l.b16 %v65
    %v136 = vunpack.c.l.b16 %v66
    %v137 = vunpack.c.l.b16 %v67
    %v138 = vunpack.c.l.b16 %v68
    %v139 = vunpack.c.l.b16 %v69
    %v140 = vunpack.c.l.b16 %v70
    %v141 = vunpack.c.l.b16 %v71
    %v142 = vunpack.c.l.b16 %v72
    %v143 = vunpack.c.l.b16 %v73
    %v144 = vunpack.c.l.b16 %v74
    %v145 = vunpack.c.l.b16 %v75
    %v146 = vunpack.c.l.b16 %v76
    %v147 = vpack.c.b16 %v116, %v115
    %v148 = vpack.c.b16 %v118, %v117
    %v149 = vpack.c.b16 %v120, %v119
    %v150 = vpack.c.b16 %v122, %v121
    %v151 = vpack.c.b16 %v124, %v123
    %v152 = vpack.c.b16 %v126, %v125
    %v153 = vpack.c.b16 %v128, %v127
    %v154 = vpack.c.b16 %v130, %v129
    %v155 = vpack.c.b16 %v132, %v131
    %v156 = vpack.c.b16 %v134, %v133
    %v157 = vpack.c.b16 %v136, %v135
    %v158 = vpack.c.b16 %v138, %v137
    %v159 = vpack.c.b16 %v140, %v139
    %v160 = vpack.c.b16 %v142, %v141
    %v161 = vpack.c.b16 %v144, %v143
    %v162 = vpack.c.b16 %v146, %v145
    %v167 = vunpack.c.l.b16 %v77
    %v168 = vunpack.c.h.b16 %v77
    %v169 = vunpack.c.l.b16 %v78
    %v170 = vunpack.c.h.b16 %v78
    %v171 = vunpack.c.l.b16 %v79
    %v172 = vunpack.c.h.b16 %v79
    %v173 = vunpack.c.l.b16 %v80
    %v174 = vunpack.c.h.b16 %v80
    %v175 = vpack.c.b16 %v169, %v167
    %v176 = vpack.c.b16 %v170, %v168
    %v177 = vpack.c.b16 %v173, %v171
    %v178 = vpack.c.b16 %v174, %v172
    %vm183 = vcmask 261120
    %v185 = vsel %vm183, %v147, 0
    %v188 = vsel %vm183, %v148, 0
    %v191 = vsel %vm183, %v149, 0
    %v194 = vsel %vm183, %v150, 0
    %v197 = vsel %vm183, %v151, 0
    %v200 = vsel %vm183, %v152, 0
    %v203 = vsel %vm183, %v153, 0
    %v206 = vsel %vm183, %v154, 0
    %v209 = vsel %vm183, %v155, 0
    %v212 = vsel %vm183, %v156, 0
    %v215 = vsel %vm183, %v157, 0
    %v218 = vsel %vm183, %v158, 0
    %v221 = vsel %vm183, %v159, 0
    %v224 = vsel %vm183, %v160, 0
    %v227 = vsel %vm183, %v161, 0
    %v230 = vsel %vm183, %v162, 0
    %232 = vmatpush.bf16.msra.mxu0 0
    %233 = vmatpush.bf16.msra.mxu0 0
    %234 = vmatpush.bf16.msra.mxu0 0
    %235 = vmatpush.bf16.msra.mxu0 0
    %236 = vmatpush.bf16.msra.mxu0 0
    %237 = vmatpush.bf16.msra.mxu0 0
    %238 = vmatpush.bf16.msra.mxu0 %v177
    %239 = vmatpush.bf16.msra.mxu0 %v175
    %240 = vmatmul.bf16.gmra.mxu0 %v185
    %v241 = vpop.f32.mrf.mxu0
    %v242 = vadd.f32 %v81, %v241
    %v243 = vpop.f32.mrf.mxu0
    %v244 = vadd.f32 %v81, %v243
    %245 = vmatmul.bf16.gmra.mxu0 %v188
    %v246 = vpop.f32.mrf.mxu0
    %v247 = vadd.f32 %v81, %v246
    %v248 = vpop.f32.mrf.mxu0
    %v249 = vadd.f32 %v81, %v248
    %250 = vmatmul.bf16.gmra.mxu0 %v191
    %v251 = vpop.f32.mrf.mxu0
    %v252 = vadd.f32 %v81, %v251
    %v253 = vpop.f32.mrf.mxu0
    %v254 = vadd.f32 %v81, %v253
    %255 = vmatmul.bf16.gmra.mxu0 %v194
    %v256 = vpop.f32.mrf.mxu0
    %v257 = vadd.f32 %v81, %v256
    %v258 = vpop.f32.mrf.mxu0
    %v259 = vadd.f32 %v81, %v258
    %260 = vmatmul.bf16.gmra.mxu0 %v197
    %v261 = vpop.f32.mrf.mxu0
    %v262 = vadd.f32 %v81, %v261
    %v263 = vpop.f32.mrf.mxu0
    %v264 = vadd.f32 %v81, %v263
    %265 = vmatmul.bf16.gmra.mxu0 %v200
    %v266 = vpop.f32.mrf.mxu0
    %v267 = vadd.f32 %v81, %v266
    %v268 = vpop.f32.mrf.mxu0
    %v269 = vadd.f32 %v81, %v268
    %270 = vmatmul.bf16.gmra.mxu0 %v203
    %v271 = vpop.f32.mrf.mxu0
    %v272 = vadd.f32 %v81, %v271
    %v273 = vpop.f32.mrf.mxu0
    %v274 = vadd.f32 %v81, %v273
    %275 = vmatmul.bf16.gmra.mxu0 %v206
    %v276 = vpop.f32.mrf.mxu0
    %v277 = vadd.f32 %v81, %v276
    %v278 = vpop.f32.mrf.mxu0
    %v279 = vadd.f32 %v81, %v278
    %280 = vmatmul.bf16.gmra.mxu0 %v209
    %v281 = vpop.f32.mrf.mxu0
    %v282 = vadd.f32 %v81, %v281
    %v283 = vpop.f32.mrf.mxu0
    %v284 = vadd.f32 %v81, %v283
    %285 = vmatmul.bf16.gmra.mxu0 %v212
    %v286 = vpop.f32.mrf.mxu0
    %v287 = vadd.f32 %v81, %v286
    %v288 = vpop.f32.mrf.mxu0
    %v289 = vadd.f32 %v81, %v288
    %290 = vmatmul.bf16.gmra.mxu0 %v215
    %v291 = vpop.f32.mrf.mxu0
    %v292 = vadd.f32 %v81, %v291
    %v293 = vpop.f32.mrf.mxu0
    %v294 = vadd.f32 %v81, %v293
    %295 = vmatmul.bf16.gmra.mxu0 %v218
    %v296 = vpop.f32.mrf.mxu0
    %v297 = vadd.f32 %v81, %v296
    %v298 = vpop.f32.mrf.mxu0
    %v299 = vadd.f32 %v81, %v298
    %300 = vmatmul.bf16.gmra.mxu0 %v221
    %v301 = vpop.f32.mrf.mxu0
    %v302 = vadd.f32 %v81, %v301
    %v303 = vpop.f32.mrf.mxu0
    %v304 = vadd.f32 %v81, %v303
    %305 = vmatmul.bf16.gmra.mxu0 %v224
    %v306 = vpop.f32.mrf.mxu0
    %v307 = vadd.f32 %v81, %v306
    %v308 = vpop.f32.mrf.mxu0
    %v309 = vadd.f32 %v81, %v308
    %310 = vmatmul.bf16.gmra.mxu0 %v227
    %v311 = vpop.f32.mrf.mxu0
    %v312 = vadd.f32 %v81, %v311
    %v313 = vpop.f32.mrf.mxu0
    %v314 = vadd.f32 %v81, %v313
    %315 = vmatmul.bf16.gmra.mxu0 %v230
    %v316 = vpop.f32.mrf.mxu0
    %v317 = vadd.f32 %v81, %v316
    %v318 = vpop.f32.mrf.mxu0
    %v319 = vadd.f32 %v81, %v318
    %320 = vdwg.mxu0
    %321 = vmatpush.bf16.msra.mxu0 0
    %322 = vmatpush.bf16.msra.mxu0 0
    %323 = vmatpush.bf16.msra.mxu0 0
    %324 = vmatpush.bf16.msra.mxu0 0
    %325 = vmatpush.bf16.msra.mxu0 0
    %326 = vmatpush.bf16.msra.mxu0 0
    %327 = vmatpush.bf16.msra.mxu0 %v178
    %328 = vmatpush.bf16.msra.mxu0 %v176
    %329 = vmatmul.bf16.gmra.mxu0 %v185
    %v330 = vpop.f32.mrf.mxu0
    %v331 = vadd.f32 %v82, %v330
    %v332 = vpop.f32.mrf.mxu0
    %v333 = vadd.f32 %v82, %v332
    %334 = vmatmul.bf16.gmra.mxu0 %v188
    %v335 = vpop.f32.mrf.mxu0
    %v336 = vadd.f32 %v82, %v335
    %v337 = vpop.f32.mrf.mxu0
    %v338 = vadd.f32 %v82, %v337
    %339 = vmatmul.bf16.gmra.mxu0 %v191
    %v340 = vpop.f32.mrf.mxu0
    %v341 = vadd.f32 %v82, %v340
    %v342 = vpop.f32.mrf.mxu0
    %v343 = vadd.f32 %v82, %v342
    %344 = vmatmul.bf16.gmra.mxu0 %v194
    %v345 = vpop.f32.mrf.mxu0
    %v346 = vadd.f32 %v82, %v345
    %v347 = vpop.f32.mrf.mxu0
    %v348 = vadd.f32 %v82, %v347
    %349 = vmatmul.bf16.gmra.mxu0 %v197
    %v350 = vpop.f32.mrf.mxu0
    %v351 = vadd.f32 %v82, %v350
    %v352 = vpop.f32.mrf.mxu0
    %v353 = vadd.f32 %v82, %v352
    %354 = vmatmul.bf16.gmra.mxu0 %v200
    %v355 = vpop.f32.mrf.mxu0
    %v356 = vadd.f32 %v82, %v355
    %v357 = vpop.f32.mrf.mxu0
    %v358 = vadd.f32 %v82, %v357
    %359 = vmatmul.bf16.gmra.mxu0 %v203
    %v360 = vpop.f32.mrf.mxu0
    %v361 = vadd.f32 %v82, %v360
    %v362 = vpop.f32.mrf.mxu0
    %v363 = vadd.f32 %v82, %v362
    %364 = vmatmul.bf16.gmra.mxu0 %v206
    %v365 = vpop.f32.mrf.mxu0
    %v366 = vadd.f32 %v82, %v365
    %v367 = vpop.f32.mrf.mxu0
    %v368 = vadd.f32 %v82, %v367
    %369 = vmatmul.bf16.gmra.mxu0 %v209
    %v370 = vpop.f32.mrf.mxu0
    %v371 = vadd.f32 %v82, %v370
    %v372 = vpop.f32.mrf.mxu0
    %v373 = vadd.f32 %v82, %v372
    %374 = vmatmul.bf16.gmra.mxu0 %v212
    %v375 = vpop.f32.mrf.mxu0
    %v376 = vadd.f32 %v82, %v375
    %v377 = vpop.f32.mrf.mxu0
    %v378 = vadd.f32 %v82, %v377
    %379 = vmatmul.bf16.gmra.mxu0 %v215
    %v380 = vpop.f32.mrf.mxu0
    %v381 = vadd.f32 %v82, %v380
    %v382 = vpop.f32.mrf.mxu0
    %v383 = vadd.f32 %v82, %v382
    %384 = vmatmul.bf16.gmra.mxu0 %v218
    %v385 = vpop.f32.mrf.mxu0
    %v386 = vadd.f32 %v82, %v385
    %v387 = vpop.f32.mrf.mxu0
    %v388 = vadd.f32 %v82, %v387
    %389 = vmatmul.bf16.gmra.mxu0 %v221
    %v390 = vpop.f32.mrf.mxu0
    %v391 = vadd.f32 %v82, %v390
    %v392 = vpop.f32.mrf.mxu0
    %v393 = vadd.f32 %v82, %v392
    %394 = vmatmul.bf16.gmra.mxu0 %v224
    %v395 = vpop.f32.mrf.mxu0
    %v396 = vadd.f32 %v82, %v395
    %v397 = vpop.f32.mrf.mxu0
    %v398 = vadd.f32 %v82, %v397
    %399 = vmatmul.bf16.gmra.mxu0 %v227
    %v400 = vpop.f32.mrf.mxu0
    %v401 = vadd.f32 %v82, %v400
    %v402 = vpop.f32.mrf.mxu0
    %v403 = vadd.f32 %v82, %v402
    %404 = vmatmul.bf16.gmra.mxu0 %v230
    %v405 = vpop.f32.mrf.mxu0
    %v406 = vadd.f32 %v82, %v405
    %v407 = vpop.f32.mrf.mxu0
    %v408 = vadd.f32 %v82, %v407
    %409 = vdwg.mxu0
    %v410 = vmax.f32 %v242, 0.0
    %v411 = vmax.f32 %v331, 0.0
    %v412 = vmax.f32 %v244, 0.0
    %v413 = vmax.f32 %v333, 0.0
    %v414 = vmax.f32 %v247, 0.0
    %v415 = vmax.f32 %v336, 0.0
    %v416 = vmax.f32 %v249, 0.0
    %v417 = vmax.f32 %v338, 0.0
    %v418 = vmax.f32 %v252, 0.0
    %v419 = vmax.f32 %v341, 0.0
    %v420 = vmax.f32 %v254, 0.0
    %v421 = vmax.f32 %v343, 0.0
    %v422 = vmax.f32 %v257, 0.0
    %v423 = vmax.f32 %v346, 0.0
    %v424 = vmax.f32 %v259, 0.0
    %v425 = vmax.f32 %v348, 0.0
    %v426 = vmax.f32 %v262, 0.0
    %v427 = vmax.f32 %v351, 0.0
    %v428 = vmax.f32 %v264, 0.0
    %v429 = vmax.f32 %v353, 0.0
    %v430 = vmax.f32 %v267, 0.0
    %v431 = vmax.f32 %v356, 0.0
    %v432 = vmax.f32 %v269, 0.0
    %v433 = vmax.f32 %v358, 0.0
    %v434 = vmax.f32 %v272, 0.0
    %v435 = vmax.f32 %v361, 0.0
    %v436 = vmax.f32 %v274, 0.0
    %v437 = vmax.f32 %v363, 0.0
    %v438 = vmax.f32 %v277, 0.0
    %v439 = vmax.f32 %v366, 0.0
    %v440 = vmax.f32 %v279, 0.0
    %v441 = vmax.f32 %v368, 0.0
    %v442 = vmax.f32 %v282, 0.0
    %v443 = vmax.f32 %v371, 0.0
    %v444 = vmax.f32 %v284, 0.0
    %v445 = vmax.f32 %v373, 0.0
    %v446 = vmax.f32 %v287, 0.0
    %v447 = vmax.f32 %v376, 0.0
    %v448 = vmax.f32 %v289, 0.0
    %v449 = vmax.f32 %v378, 0.0
    %v450 = vmax.f32 %v292, 0.0
    %v451 = vmax.f32 %v381, 0.0
    %v452 = vmax.f32 %v294, 0.0
    %v453 = vmax.f32 %v383, 0.0
    %v454 = vmax.f32 %v297, 0.0
    %v455 = vmax.f32 %v386, 0.0
    %v456 = vmax.f32 %v299, 0.0
    %v457 = vmax.f32 %v388, 0.0
    %v458 = vmax.f32 %v302, 0.0
    %v459 = vmax.f32 %v391, 0.0
    %v460 = vmax.f32 %v304, 0.0
    %v461 = vmax.f32 %v393, 0.0
    %v462 = vmax.f32 %v307, 0.0
    %v463 = vmax.f32 %v396, 0.0
    %v464 = vmax.f32 %v309, 0.0
    %v465 = vmax.f32 %v398, 0.0
    %v466 = vmax.f32 %v312, 0.0
    %v467 = vmax.f32 %v401, 0.0
    %v468 = vmax.f32 %v314, 0.0
    %v469 = vmax.f32 %v403, 0.0
    %v470 = vmax.f32 %v317, 0.0
    %v471 = vmax.f32 %v406, 0.0
    %v472 = vmax.f32 %v319, 0.0
    %v473 = vmax.f32 %v408, 0.0
    %v474 = vpack.c.bf16 %v412, %v410
    %v475 = vpack.c.bf16 %v413, %v411
    %v476 = vpack.c.bf16 %v416, %v414
    %v477 = vpack.c.bf16 %v417, %v415
    %v478 = vpack.c.bf16 %v420, %v418
    %v479 = vpack.c.bf16 %v421, %v419
    %v480 = vpack.c.bf16 %v424, %v422
    %v481 = vpack.c.bf16 %v425, %v423
    %v482 = vpack.c.bf16 %v428, %v426
    %v483 = vpack.c.bf16 %v429, %v427
    %v484 = vpack.c.bf16 %v432, %v430
    %v485 = vpack.c.bf16 %v433, %v431
    %v486 = vpack.c.bf16 %v436, %v434
    %v487 = vpack.c.bf16 %v437, %v435
    %v488 = vpack.c.bf16 %v440, %v438
    %v489 = vpack.c.bf16 %v441, %v439
    %v490 = vpack.c.bf16 %v444, %v442
    %v491 = vpack.c.bf16 %v445, %v443
    %v492 = vpack.c.bf16 %v448, %v446
    %v493 = vpack.c.bf16 %v449, %v447
    %v494 = vpack.c.bf16 %v452, %v450
    %v495 = vpack.c.bf16 %v453, %v451
    %v496 = vpack.c.bf16 %v456, %v454
    %v497 = vpack.c.bf16 %v457, %v455
    %v498 = vpack.c.bf16 %v460, %v458
    %v499 = vpack.c.bf16 %v461, %v459
    %v500 = vpack.c.bf16 %v464, %v462
    %v501 = vpack.c.bf16 %v465, %v463
    %v502 = vpack.c.bf16 %v468, %v466
    %v503 = vpack.c.bf16 %v469, %v467
    %v504 = vpack.c.bf16 %v472, %v470
    %v505 = vpack.c.bf16 %v473, %v471
    %v506 = vld [vmem:[%s2] sm:$0xff]
    %v507 = vld [vmem:[%s2 + $0x8] sm:$0xff]
    %v508 = vld [vmem:[%s2 + $0x10] sm:$0xff]
    %v509 = vld [vmem:[%s2 + $0x18] sm:$0xff]
    %v510 = vld [vmem:[%s2 + $0x20] sm:$0xff]
    %v511 = vld [vmem:[%s2 + $0x28] sm:$0xff]
    %v512 = vld [vmem:[%s2 + $0x30] sm:$0xff]
    %v513 = vld [vmem:[%s2 + $0x38] sm:$0xff]
    %v514 = vld [vmem:[%s2 + $0x40] sm:$0xff]
    %v515 = vld [vmem:[%s2 + $0x48] sm:$0xff]
    %v516 = vld [vmem:[%s2 + $0x50] sm:$0xff]
    %v517 = vld [vmem:[%s2 + $0x58] sm:$0xff]
    %v518 = vld [vmem:[%s2 + $0x60] sm:$0xff]
    %v519 = vld [vmem:[%s2 + $0x68] sm:$0xff]
    %v520 = vld [vmem:[%s2 + $0x70] sm:$0xff]
    %v521 = vld [vmem:[%s2 + $0x78] sm:$0xff]
    %v522 = vld [vmem:[%s2 + $0x80] sm:$0xff]
    %v523 = vld [vmem:[%s2 + $0x88] sm:$0xff]
    %v524 = vld [vmem:[%s2 + $0x90] sm:$0xff]
    %v525 = vld [vmem:[%s2 + $0x98] sm:$0xff]
    %v526 = vld [vmem:[%s2 + $0xa0] sm:$0xff]
    %v527 = vld [vmem:[%s2 + $0xa8] sm:$0xff]
    %v528 = vld [vmem:[%s2 + $0xb0] sm:$0xff]
    %v529 = vld [vmem:[%s2 + $0xb8] sm:$0xff]
    %v530 = vld [vmem:[%s2 + $0xc0] sm:$0xff]
    %v531 = vld [vmem:[%s2 + $0xc8] sm:$0xff]
    %v532 = vld [vmem:[%s2 + $0xd0] sm:$0xff]
    %v533 = vld [vmem:[%s2 + $0xd8] sm:$0xff]
    %v534 = vld [vmem:[%s2 + $0xe0] sm:$0xff]
    %v535 = vld [vmem:[%s2 + $0xe8] sm:$0xff]
    %v536 = vld [vmem:[%s2 + $0xf0] sm:$0xff]
    %v537 = vld [vmem:[%s2 + $0xf8] sm:$0xff]
    %v538 = vperm.slane %v43, 1
    %v539 = vperm.slane %v44, 1
    %v572 = vunpack.c.l.b16 %v506
    %v573 = vunpack.c.h.b16 %v506
    %v574 = vunpack.c.l.b16 %v507
    %v575 = vunpack.c.h.b16 %v507
    %v576 = vunpack.c.l.b16 %v508
    %v577 = vunpack.c.h.b16 %v508
    %v578 = vunpack.c.l.b16 %v509
    %v579 = vunpack.c.h.b16 %v509
    %v580 = vunpack.c.l.b16 %v510
    %v581 = vunpack.c.h.b16 %v510
    %v582 = vunpack.c.l.b16 %v511
    %v583 = vunpack.c.h.b16 %v511
    %v584 = vunpack.c.l.b16 %v512
    %v585 = vunpack.c.h.b16 %v512
    %v586 = vunpack.c.l.b16 %v513
    %v587 = vunpack.c.h.b16 %v513
    %v588 = vunpack.c.l.b16 %v514
    %v589 = vunpack.c.h.b16 %v514
    %v590 = vunpack.c.l.b16 %v515
    %v591 = vunpack.c.h.b16 %v515
    %v592 = vunpack.c.l.b16 %v516
    %v593 = vunpack.c.h.b16 %v516
    %v594 = vunpack.c.l.b16 %v517
    %v595 = vunpack.c.h.b16 %v517
    %v596 = vunpack.c.l.b16 %v518
    %v597 = vunpack.c.h.b16 %v518
    %v598 = vunpack.c.l.b16 %v519
    %v599 = vunpack.c.h.b16 %v519
    %v600 = vunpack.c.l.b16 %v520
    %v601 = vunpack.c.h.b16 %v520
    %v602 = vunpack.c.l.b16 %v521
    %v603 = vunpack.c.h.b16 %v521
    %v604 = vunpack.c.l.b16 %v522
    %v605 = vunpack.c.h.b16 %v522
    %v606 = vunpack.c.l.b16 %v523
    %v607 = vunpack.c.h.b16 %v523
    %v608 = vunpack.c.l.b16 %v524
    %v609 = vunpack.c.h.b16 %v524
    %v610 = vunpack.c.l.b16 %v525
    %v611 = vunpack.c.h.b16 %v525
    %v612 = vunpack.c.l.b16 %v526
    %v613 = vunpack.c.h.b16 %v526
    %v614 = vunpack.c.l.b16 %v527
    %v615 = vunpack.c.h.b16 %v527
    %v616 = vunpack.c.l.b16 %v528
    %v617 = vunpack.c.h.b16 %v528
    %v618 = vunpack.c.l.b16 %v529
    %v619 = vunpack.c.h.b16 %v529
    %v620 = vunpack.c.l.b16 %v530
    %v621 = vunpack.c.h.b16 %v530
    %v622 = vunpack.c.l.b16 %v531
    %v623 = vunpack.c.h.b16 %v531
    %v624 = vunpack.c.l.b16 %v532
    %v625 = vunpack.c.h.b16 %v532
    %v626 = vunpack.c.l.b16 %v533
    %v627 = vunpack.c.h.b16 %v533
    %v628 = vunpack.c.l.b16 %v534
    %v629 = vunpack.c.h.b16 %v534
    %v630 = vunpack.c.l.b16 %v535
    %v631 = vunpack.c.h.b16 %v535
    %v632 = vunpack.c.l.b16 %v536
    %v633 = vunpack.c.h.b16 %v536
    %v634 = vunpack.c.l.b16 %v537
    %v635 = vunpack.c.h.b16 %v537
    %v636 = vpack.c.b16 %v574, %v572
    %v637 = vpack.c.b16 %v575, %v573
    %v638 = vpack.c.b16 %v578, %v576
    %v639 = vpack.c.b16 %v579, %v577
    %v640 = vpack.c.b16 %v582, %v580
    %v641 = vpack.c.b16 %v583, %v581
    %v642 = vpack.c.b16 %v586, %v584
    %v643 = vpack.c.b16 %v587, %v585
    %v644 = vpack.c.b16 %v590, %v588
    %v645 = vpack.c.b16 %v591, %v589
    %v646 = vpack.c.b16 %v594, %v592
    %v647 = vpack.c.b16 %v595, %v593
    %v648 = vpack.c.b16 %v598, %v596
    %v649 = vpack.c.b16 %v599, %v597
    %v650 = vpack.c.b16 %v602, %v600
    %v651 = vpack.c.b16 %v603, %v601
    %v652 = vpack.c.b16 %v606, %v604
    %v653 = vpack.c.b16 %v607, %v605
    %v654 = vpack.c.b16 %v610, %v608
    %v655 = vpack.c.b16 %v611, %v609
    %v656 = vpack.c.b16 %v614, %v612
    %v657 = vpack.c.b16 %v615, %v613
    %v658 = vpack.c.b16 %v618, %v616
    %v659 = vpack.c.b16 %v619, %v617
    %v660 = vpack.c.b16 %v622, %v620
    %v661 = vpack.c.b16 %v623, %v621
    %v662 = vpack.c.b16 %v626, %v624
    %v663 = vpack.c.b16 %v627, %v625
    %v664 = vpack.c.b16 %v630, %v628
    %v665 = vpack.c.b16 %v631, %v629
    %v666 = vpack.c.b16 %v634, %v632
    %v667 = vpack.c.b16 %v635, %v633
    %700 = vmatpush.bf16.msra.mxu0 %v650
    %701 = vmatpush.bf16.msra.mxu0 %v648
    %702 = vmatpush.bf16.msra.mxu0 %v646
    %703 = vmatpush.bf16.msra.mxu0 %v644
    %704 = vmatpush.bf16.msra.mxu0 %v642
    %705 = vmatpush.bf16.msra.mxu0 %v640
    %706 = vmatpush.bf16.msra.mxu0 %v638
    %707 = vmatpush.bf16.msra.mxu0 %v636
    %708 = vmatmul.bf16.gmra.mxu0 %v474
    %v709 = vpop.f32.mrf.mxu0
    %v710 = vadd.f32 %v538, %v709
    %v711 = vpop.f32.mrf.mxu0
    %v712 = vadd.f32 %v538, %v711
    %713 = vmatmul.bf16.gmra.mxu0 %v476
    %v714 = vpop.f32.mrf.mxu0
    %v715 = vadd.f32 %v538, %v714
    %v716 = vpop.f32.mrf.mxu0
    %v717 = vadd.f32 %v538, %v716
    %718 = vmatmul.bf16.gmra.mxu0 %v478
    %v719 = vpop.f32.mrf.mxu0
    %v720 = vadd.f32 %v538, %v719
    %v721 = vpop.f32.mrf.mxu0
    %v722 = vadd.f32 %v538, %v721
    %723 = vmatmul.bf16.gmra.mxu0 %v480
    %v724 = vpop.f32.mrf.mxu0
    %v725 = vadd.f32 %v538, %v724
    %v726 = vpop.f32.mrf.mxu0
    %v727 = vadd.f32 %v538, %v726
    %728 = vmatmul.bf16.gmra.mxu0 %v482
    %v729 = vpop.f32.mrf.mxu0
    %v730 = vadd.f32 %v538, %v729
    %v731 = vpop.f32.mrf.mxu0
    %v732 = vadd.f32 %v538, %v731
    %733 = vmatmul.bf16.gmra.mxu0 %v484
    %v734 = vpop.f32.mrf.mxu0
    %v735 = vadd.f32 %v538, %v734
    %v736 = vpop.f32.mrf.mxu0
    %v737 = vadd.f32 %v538, %v736
    %738 = vmatmul.bf16.gmra.mxu0 %v486
    %v739 = vpop.f32.mrf.mxu0
    %v740 = vadd.f32 %v538, %v739
    %v741 = vpop.f32.mrf.mxu0
    %v742 = vadd.f32 %v538, %v741
    %743 = vmatmul.bf16.gmra.mxu0 %v488
    %v744 = vpop.f32.mrf.mxu0
    %v745 = vadd.f32 %v538, %v744
    %v746 = vpop.f32.mrf.mxu0
    %v747 = vadd.f32 %v538, %v746
    %748 = vmatmul.bf16.gmra.mxu0 %v490
    %v749 = vpop.f32.mrf.mxu0
    %v750 = vadd.f32 %v538, %v749
    %v751 = vpop.f32.mrf.mxu0
    %v752 = vadd.f32 %v538, %v751
    %753 = vmatmul.bf16.gmra.mxu0 %v492
    %v754 = vpop.f32.mrf.mxu0
    %v755 = vadd.f32 %v538, %v754
    %v756 = vpop.f32.mrf.mxu0
    %v757 = vadd.f32 %v538, %v756
    %758 = vmatmul.bf16.gmra.mxu0 %v494
    %v759 = vpop.f32.mrf.mxu0
    %v760 = vadd.f32 %v538, %v759
    %v761 = vpop.f32.mrf.mxu0
    %v762 = vadd.f32 %v538, %v761
    %763 = vmatmul.bf16.gmra.mxu0 %v496
    %v764 = vpop.f32.mrf.mxu0
    %v765 = vadd.f32 %v538, %v764
    %v766 = vpop.f32.mrf.mxu0
    %v767 = vadd.f32 %v538, %v766
    %768 = vmatmul.bf16.gmra.mxu0 %v498
    %v769 = vpop.f32.mrf.mxu0
    %v770 = vadd.f32 %v538, %v769
    %v771 = vpop.f32.mrf.mxu0
    %v772 = vadd.f32 %v538, %v771
    %773 = vmatmul.bf16.gmra.mxu0 %v500
    %v774 = vpop.f32.mrf.mxu0
    %v775 = vadd.f32 %v538, %v774
    %v776 = vpop.f32.mrf.mxu0
    %v777 = vadd.f32 %v538, %v776
    %778 = vmatmul.bf16.gmra.mxu0 %v502
    %v779 = vpop.f32.mrf.mxu0
    %v780 = vadd.f32 %v538, %v779
    %v781 = vpop.f32.mrf.mxu0
    %v782 = vadd.f32 %v538, %v781
    %783 = vmatmul.bf16.gmra.mxu0 %v504
    %v784 = vpop.f32.mrf.mxu0
    %v785 = vadd.f32 %v538, %v784
    %v786 = vpop.f32.mrf.mxu0
    %v787 = vadd.f32 %v538, %v786
    %788 = vdwg.mxu0
    %789 = vmatpush.bf16.msra.mxu0 %v666
    %790 = vmatpush.bf16.msra.mxu0 %v664
    %791 = vmatpush.bf16.msra.mxu0 %v662
    %792 = vmatpush.bf16.msra.mxu0 %v660
    %793 = vmatpush.bf16.msra.mxu0 %v658
    %794 = vmatpush.bf16.msra.mxu0 %v656
    %795 = vmatpush.bf16.msra.mxu0 %v654
    %796 = vmatpush.bf16.msra.mxu0 %v652
    %797 = vmatmul.bf16.gmra.mxu0 %v475
    %v798 = vpop.f32.mrf.mxu0
    %v799 = vadd.f32 %v710, %v798
    %v800 = vpop.f32.mrf.mxu0
    %v801 = vadd.f32 %v712, %v800
    %802 = vmatmul.bf16.gmra.mxu0 %v477
    %v803 = vpop.f32.mrf.mxu0
    %v804 = vadd.f32 %v715, %v803
    %v805 = vpop.f32.mrf.mxu0
    %v806 = vadd.f32 %v717, %v805
    %807 = vmatmul.bf16.gmra.mxu0 %v479
    %v808 = vpop.f32.mrf.mxu0
    %v809 = vadd.f32 %v720, %v808
    %v810 = vpop.f32.mrf.mxu0
    %v811 = vadd.f32 %v722, %v810
    %812 = vmatmul.bf16.gmra.mxu0 %v481
    %v813 = vpop.f32.mrf.mxu0
    %v814 = vadd.f32 %v725, %v813
    %v815 = vpop.f32.mrf.mxu0
    %v816 = vadd.f32 %v727, %v815
    %817 = vmatmul.bf16.gmra.mxu0 %v483
    %v818 = vpop.f32.mrf.mxu0
    %v819 = vadd.f32 %v730, %v818
    %v820 = vpop.f32.mrf.mxu0
    %v821 = vadd.f32 %v732, %v820
    %822 = vmatmul.bf16.gmra.mxu0 %v485
    %v823 = vpop.f32.mrf.mxu0
    %v824 = vadd.f32 %v735, %v823
    %v825 = vpop.f32.mrf.mxu0
    %v826 = vadd.f32 %v737, %v825
    %827 = vmatmul.bf16.gmra.mxu0 %v487
    %v828 = vpop.f32.mrf.mxu0
    %v829 = vadd.f32 %v740, %v828
    %v830 = vpop.f32.mrf.mxu0
    %v831 = vadd.f32 %v742, %v830
    %832 = vmatmul.bf16.gmra.mxu0 %v489
    %v833 = vpop.f32.mrf.mxu0
    %v834 = vadd.f32 %v745, %v833
    %v835 = vpop.f32.mrf.mxu0
    %v836 = vadd.f32 %v747, %v835
    %837 = vmatmul.bf16.gmra.mxu0 %v491
    %v838 = vpop.f32.mrf.mxu0
    %v839 = vadd.f32 %v750, %v838
    %v840 = vpop.f32.mrf.mxu0
    %v841 = vadd.f32 %v752, %v840
    %842 = vmatmul.bf16.gmra.mxu0 %v493
    %v843 = vpop.f32.mrf.mxu0
    %v844 = vadd.f32 %v755, %v843
    %v845 = vpop.f32.mrf.mxu0
    %v846 = vadd.f32 %v757, %v845
    %847 = vmatmul.bf16.gmra.mxu0 %v495
    %v848 = vpop.f32.mrf.mxu0
    %v849 = vadd.f32 %v760, %v848
    %v850 = vpop.f32.mrf.mxu0
    %v851 = vadd.f32 %v762, %v850
    %852 = vmatmul.bf16.gmra.mxu0 %v497
    %v853 = vpop.f32.mrf.mxu0
    %v854 = vadd.f32 %v765, %v853
    %v855 = vpop.f32.mrf.mxu0
    %v856 = vadd.f32 %v767, %v855
    %857 = vmatmul.bf16.gmra.mxu0 %v499
    %v858 = vpop.f32.mrf.mxu0
    %v859 = vadd.f32 %v770, %v858
    %v860 = vpop.f32.mrf.mxu0
    %v861 = vadd.f32 %v772, %v860
    %862 = vmatmul.bf16.gmra.mxu0 %v501
    %v863 = vpop.f32.mrf.mxu0
    %v864 = vadd.f32 %v775, %v863
    %v865 = vpop.f32.mrf.mxu0
    %v866 = vadd.f32 %v777, %v865
    %867 = vmatmul.bf16.gmra.mxu0 %v503
    %v868 = vpop.f32.mrf.mxu0
    %v869 = vadd.f32 %v780, %v868
    %v870 = vpop.f32.mrf.mxu0
    %v871 = vadd.f32 %v782, %v870
    %872 = vmatmul.bf16.gmra.mxu0 %v505
    %v873 = vpop.f32.mrf.mxu0
    %v874 = vadd.f32 %v785, %v873
    %v875 = vpop.f32.mrf.mxu0
    %v876 = vadd.f32 %v787, %v875
    %877 = vdwg.mxu0
    %878 = vmatpush.bf16.msra.mxu0 %v651
    %879 = vmatpush.bf16.msra.mxu0 %v649
    %880 = vmatpush.bf16.msra.mxu0 %v647
    %881 = vmatpush.bf16.msra.mxu0 %v645
    %882 = vmatpush.bf16.msra.mxu0 %v643
    %883 = vmatpush.bf16.msra.mxu0 %v641
    %884 = vmatpush.bf16.msra.mxu0 %v639
    %885 = vmatpush.bf16.msra.mxu0 %v637
    %886 = vmatmul.bf16.gmra.mxu0 %v474
    %v887 = vpop.f32.mrf.mxu0
    %v888 = vadd.f32 %v539, %v887
    %v889 = vpop.f32.mrf.mxu0
    %v890 = vadd.f32 %v539, %v889
    %891 = vmatmul.bf16.gmra.mxu0 %v476
    %v892 = vpop.f32.mrf.mxu0
    %v893 = vadd.f32 %v539, %v892
    %v894 = vpop.f32.mrf.mxu0
    %v895 = vadd.f32 %v539, %v894
    %896 = vmatmul.bf16.gmra.mxu0 %v478
    %v897 = vpop.f32.mrf.mxu0
    %v898 = vadd.f32 %v539, %v897
    %v899 = vpop.f32.mrf.mxu0
    %v900 = vadd.f32 %v539, %v899
    %901 = vmatmul.bf16.gmra.mxu0 %v480
    %v902 = vpop.f32.mrf.mxu0
    %v903 = vadd.f32 %v539, %v902
    %v904 = vpop.f32.mrf.mxu0
    %v905 = vadd.f32 %v539, %v904
    %906 = vmatmul.bf16.gmra.mxu0 %v482
    %v907 = vpop.f32.mrf.mxu0
    %v908 = vadd.f32 %v539, %v907
    %v909 = vpop.f32.mrf.mxu0
    %v910 = vadd.f32 %v539, %v909
    %911 = vmatmul.bf16.gmra.mxu0 %v484
    %v912 = vpop.f32.mrf.mxu0
    %v913 = vadd.f32 %v539, %v912
    %v914 = vpop.f32.mrf.mxu0
    %v915 = vadd.f32 %v539, %v914
    %916 = vmatmul.bf16.gmra.mxu0 %v486
    %v917 = vpop.f32.mrf.mxu0
    %v918 = vadd.f32 %v539, %v917
    %v919 = vpop.f32.mrf.mxu0
    %v920 = vadd.f32 %v539, %v919
    %921 = vmatmul.bf16.gmra.mxu0 %v488
    %v922 = vpop.f32.mrf.mxu0
    %v923 = vadd.f32 %v539, %v922
    %v924 = vpop.f32.mrf.mxu0
    %v925 = vadd.f32 %v539, %v924
    %926 = vmatmul.bf16.gmra.mxu0 %v490
    %v927 = vpop.f32.mrf.mxu0
    %v928 = vadd.f32 %v539, %v927
    %v929 = vpop.f32.mrf.mxu0
    %v930 = vadd.f32 %v539, %v929
    %931 = vmatmul.bf16.gmra.mxu0 %v492
    %v932 = vpop.f32.mrf.mxu0
    %v933 = vadd.f32 %v539, %v932
    %v934 = vpop.f32.mrf.mxu0
    %v935 = vadd.f32 %v539, %v934
    %936 = vmatmul.bf16.gmra.mxu0 %v494
    %v937 = vpop.f32.mrf.mxu0
    %v938 = vadd.f32 %v539, %v937
    %v939 = vpop.f32.mrf.mxu0
    %v940 = vadd.f32 %v539, %v939
    %941 = vmatmul.bf16.gmra.mxu0 %v496
    %v942 = vpop.f32.mrf.mxu0
    %v943 = vadd.f32 %v539, %v942
    %v944 = vpop.f32.mrf.mxu0
    %v945 = vadd.f32 %v539, %v944
    %946 = vmatmul.bf16.gmra.mxu0 %v498
    %v947 = vpop.f32.mrf.mxu0
    %v948 = vadd.f32 %v539, %v947
    %v949 = vpop.f32.mrf.mxu0
    %v950 = vadd.f32 %v539, %v949
    %951 = vmatmul.bf16.gmra.mxu0 %v500
    %v952 = vpop.f32.mrf.mxu0
    %v953 = vadd.f32 %v539, %v952
    %v954 = vpop.f32.mrf.mxu0
    %v955 = vadd.f32 %v539, %v954
    %956 = vmatmul.bf16.gmra.mxu0 %v502
    %v957 = vpop.f32.mrf.mxu0
    %v958 = vadd.f32 %v539, %v957
    %v959 = vpop.f32.mrf.mxu0
    %v960 = vadd.f32 %v539, %v959
    %961 = vmatmul.bf16.gmra.mxu0 %v504
    %v962 = vpop.f32.mrf.mxu0
    %v963 = vadd.f32 %v539, %v962
    %v964 = vpop.f32.mrf.mxu0
    %v965 = vadd.f32 %v539, %v964
    %966 = vdwg.mxu0
    %967 = vmatpush.bf16.msra.mxu0 %v667
    %968 = vmatpush.bf16.msra.mxu0 %v665
    %969 = vmatpush.bf16.msra.mxu0 %v663
    %970 = vmatpush.bf16.msra.mxu0 %v661
    %971 = vmatpush.bf16.msra.mxu0 %v659
    %972 = vmatpush.bf16.msra.mxu0 %v657
    %973 = vmatpush.bf16.msra.mxu0 %v655
    %974 = vmatpush.bf16.msra.mxu0 %v653
    %975 = vmatmul.bf16.gmra.mxu0 %v475
    %v976 = vpop.f32.mrf.mxu0
    %v977 = vadd.f32 %v888, %v976
    %v978 = vpop.f32.mrf.mxu0
    %v979 = vadd.f32 %v890, %v978
    %980 = vmatmul.bf16.gmra.mxu0 %v477
    %v981 = vpop.f32.mrf.mxu0
    %v982 = vadd.f32 %v893, %v981
    %v983 = vpop.f32.mrf.mxu0
    %v984 = vadd.f32 %v895, %v983
    %985 = vmatmul.bf16.gmra.mxu0 %v479
    %v986 = vpop.f32.mrf.mxu0
    %v987 = vadd.f32 %v898, %v986
    %v988 = vpop.f32.mrf.mxu0
    %v989 = vadd.f32 %v900, %v988
    %990 = vmatmul.bf16.gmra.mxu0 %v481
    %v991 = vpop.f32.mrf.mxu0
    %v992 = vadd.f32 %v903, %v991
    %v993 = vpop.f32.mrf.mxu0
    %v994 = vadd.f32 %v905, %v993
    %995 = vmatmul.bf16.gmra.mxu0 %v483
    %v996 = vpop.f32.mrf.mxu0
    %v997 = vadd.f32 %v908, %v996
    %v998 = vpop.f32.mrf.mxu0
    %v999 = vadd.f32 %v910, %v998
    %1000 = vmatmul.bf16.gmra.mxu0 %v485
    %v1001 = vpop.f32.mrf.mxu0
    %v1002 = vadd.f32 %v913, %v1001
    %v1003 = vpop.f32.mrf.mxu0
    %v1004 = vadd.f32 %v915, %v1003
    %1005 = vmatmul.bf16.gmra.mxu0 %v487
    %v1006 = vpop.f32.mrf.mxu0
    %v1007 = vadd.f32 %v918, %v1006
    %v1008 = vpop.f32.mrf.mxu0
    %v1009 = vadd.f32 %v920, %v1008
    %1010 = vmatmul.bf16.gmra.mxu0 %v489
    %v1011 = vpop.f32.mrf.mxu0
    %v1012 = vadd.f32 %v923, %v1011
    %v1013 = vpop.f32.mrf.mxu0
    %v1014 = vadd.f32 %v925, %v1013
    %1015 = vmatmul.bf16.gmra.mxu0 %v491
    %v1016 = vpop.f32.mrf.mxu0
    %v1017 = vadd.f32 %v928, %v1016
    %v1018 = vpop.f32.mrf.mxu0
    %v1019 = vadd.f32 %v930, %v1018
    %1020 = vmatmul.bf16.gmra.mxu0 %v493
    %v1021 = vpop.f32.mrf.mxu0
    %v1022 = vadd.f32 %v933, %v1021
    %v1023 = vpop.f32.mrf.mxu0
    %v1024 = vadd.f32 %v935, %v1023
    %1025 = vmatmul.bf16.gmra.mxu0 %v495
    %v1026 = vpop.f32.mrf.mxu0
    %v1027 = vadd.f32 %v938, %v1026
    %v1028 = vpop.f32.mrf.mxu0
    %v1029 = vadd.f32 %v940, %v1028
    %1030 = vmatmul.bf16.gmra.mxu0 %v497
    %v1031 = vpop.f32.mrf.mxu0
    %v1032 = vadd.f32 %v943, %v1031
    %v1033 = vpop.f32.mrf.mxu0
    %v1034 = vadd.f32 %v945, %v1033
    %1035 = vmatmul.bf16.gmra.mxu0 %v499
    %v1036 = vpop.f32.mrf.mxu0
    %v1037 = vadd.f32 %v948, %v1036
    %v1038 = vpop.f32.mrf.mxu0
    %v1039 = vadd.f32 %v950, %v1038
    %1040 = vmatmul.bf16.gmra.mxu0 %v501
    %v1041 = vpop.f32.mrf.mxu0
    %v1042 = vadd.f32 %v953, %v1041
    %v1043 = vpop.f32.mrf.mxu0
    %v1044 = vadd.f32 %v955, %v1043
    %1045 = vmatmul.bf16.gmra.mxu0 %v503
    %v1046 = vpop.f32.mrf.mxu0
    %v1047 = vadd.f32 %v958, %v1046
    %v1048 = vpop.f32.mrf.mxu0
    %v1049 = vadd.f32 %v960, %v1048
    %1050 = vmatmul.bf16.gmra.mxu0 %v505
    %v1051 = vpop.f32.mrf.mxu0
    %v1052 = vadd.f32 %v963, %v1051
    %v1053 = vpop.f32.mrf.mxu0
    %v1054 = vadd.f32 %v965, %v1053
    %1055 = vdwg.mxu0
    %v1056 = vmax.f32 %v799, 0.0
    %v1057 = vmax.f32 %v977, 0.0
    %v1058 = vmax.f32 %v801, 0.0
    %v1059 = vmax.f32 %v979, 0.0
    %v1060 = vmax.f32 %v804, 0.0
    %v1061 = vmax.f32 %v982, 0.0
    %v1062 = vmax.f32 %v806, 0.0
    %v1063 = vmax.f32 %v984, 0.0
    %v1064 = vmax.f32 %v809, 0.0
    %v1065 = vmax.f32 %v987, 0.0
    %v1066 = vmax.f32 %v811, 0.0
    %v1067 = vmax.f32 %v989, 0.0
    %v1068 = vmax.f32 %v814, 0.0
    %v1069 = vmax.f32 %v992, 0.0
    %v1070 = vmax.f32 %v816, 0.0
    %v1071 = vmax.f32 %v994, 0.0
    %v1072 = vmax.f32 %v819, 0.0
    %v1073 = vmax.f32 %v997, 0.0
    %v1074 = vmax.f32 %v821, 0.0
    %v1075 = vmax.f32 %v999, 0.0
    %v1076 = vmax.f32 %v824, 0.0
    %v1077 = vmax.f32 %v1002, 0.0
    %v1078 = vmax.f32 %v826, 0.0
    %v1079 = vmax.f32 %v1004, 0.0
    %v1080 = vmax.f32 %v829, 0.0
    %v1081 = vmax.f32 %v1007, 0.0
    %v1082 = vmax.f32 %v831, 0.0
    %v1083 = vmax.f32 %v1009, 0.0
    %v1084 = vmax.f32 %v834, 0.0
    %v1085 = vmax.f32 %v1012, 0.0
    %v1086 = vmax.f32 %v836, 0.0
    %v1087 = vmax.f32 %v1014, 0.0
    %v1088 = vmax.f32 %v839, 0.0
    %v1089 = vmax.f32 %v1017, 0.0
    %v1090 = vmax.f32 %v841, 0.0
    %v1091 = vmax.f32 %v1019, 0.0
    %v1092 = vmax.f32 %v844, 0.0
    %v1093 = vmax.f32 %v1022, 0.0
    %v1094 = vmax.f32 %v846, 0.0
    %v1095 = vmax.f32 %v1024, 0.0
    %v1096 = vmax.f32 %v849, 0.0
    %v1097 = vmax.f32 %v1027, 0.0
    %v1098 = vmax.f32 %v851, 0.0
    %v1099 = vmax.f32 %v1029, 0.0
    %v1100 = vmax.f32 %v854, 0.0
    %v1101 = vmax.f32 %v1032, 0.0
    %v1102 = vmax.f32 %v856, 0.0
    %v1103 = vmax.f32 %v1034, 0.0
    %v1104 = vmax.f32 %v859, 0.0
    %v1105 = vmax.f32 %v1037, 0.0
    %v1106 = vmax.f32 %v861, 0.0
    %v1107 = vmax.f32 %v1039, 0.0
    %v1108 = vmax.f32 %v864, 0.0
    %v1109 = vmax.f32 %v1042, 0.0
    %v1110 = vmax.f32 %v866, 0.0
    %v1111 = vmax.f32 %v1044, 0.0
    %v1112 = vmax.f32 %v869, 0.0
    %v1113 = vmax.f32 %v1047, 0.0
    %v1114 = vmax.f32 %v871, 0.0
    %v1115 = vmax.f32 %v1049, 0.0
    %v1116 = vmax.f32 %v874, 0.0
    %v1117 = vmax.f32 %v1052, 0.0
    %v1118 = vmax.f32 %v876, 0.0
    %v1119 = vmax.f32 %v1054, 0.0
    %v1120 = vadd.f32 %v410, %v1056
    %v1121 = vadd.f32 %v411, %v1057
    %v1122 = vadd.f32 %v412, %v1058
    %v1123 = vadd.f32 %v413, %v1059
    %v1124 = vadd.f32 %v414, %v1060
    %v1125 = vadd.f32 %v415, %v1061
    %v1126 = vadd.f32 %v416, %v1062
    %v1127 = vadd.f32 %v417, %v1063
    %v1128 = vadd.f32 %v418, %v1064
    %v1129 = vadd.f32 %v419, %v1065
    %v1130 = vadd.f32 %v420, %v1066
    %v1131 = vadd.f32 %v421, %v1067
    %v1132 = vadd.f32 %v422, %v1068
    %v1133 = vadd.f32 %v423, %v1069
    %v1134 = vadd.f32 %v424, %v1070
    %v1135 = vadd.f32 %v425, %v1071
    %v1136 = vadd.f32 %v426, %v1072
    %v1137 = vadd.f32 %v427, %v1073
    %v1138 = vadd.f32 %v428, %v1074
    %v1139 = vadd.f32 %v429, %v1075
    %v1140 = vadd.f32 %v430, %v1076
    %v1141 = vadd.f32 %v431, %v1077
    %v1142 = vadd.f32 %v432, %v1078
    %v1143 = vadd.f32 %v433, %v1079
    %v1144 = vadd.f32 %v434, %v1080
    %v1145 = vadd.f32 %v435, %v1081
    %v1146 = vadd.f32 %v436, %v1082
    %v1147 = vadd.f32 %v437, %v1083
    %v1148 = vadd.f32 %v438, %v1084
    %v1149 = vadd.f32 %v439, %v1085
    %v1150 = vadd.f32 %v440, %v1086
    %v1151 = vadd.f32 %v441, %v1087
    %v1152 = vadd.f32 %v442, %v1088
    %v1153 = vadd.f32 %v443, %v1089
    %v1154 = vadd.f32 %v444, %v1090
    %v1155 = vadd.f32 %v445, %v1091
    %v1156 = vadd.f32 %v446, %v1092
    %v1157 = vadd.f32 %v447, %v1093
    %v1158 = vadd.f32 %v448, %v1094
    %v1159 = vadd.f32 %v449, %v1095
    %v1160 = vadd.f32 %v450, %v1096
    %v1161 = vadd.f32 %v451, %v1097
    %v1162 = vadd.f32 %v452, %v1098
    %v1163 = vadd.f32 %v453, %v1099
    %v1164 = vadd.f32 %v454, %v1100
    %v1165 = vadd.f32 %v455, %v1101
    %v1166 = vadd.f32 %v456, %v1102
    %v1167 = vadd.f32 %v457, %v1103
    %v1168 = vadd.f32 %v458, %v1104
    %v1169 = vadd.f32 %v459, %v1105
    %v1170 = vadd.f32 %v460, %v1106
    %v1171 = vadd.f32 %v461, %v1107
    %v1172 = vadd.f32 %v462, %v1108
    %v1173 = vadd.f32 %v463, %v1109
    %v1174 = vadd.f32 %v464, %v1110
    %v1175 = vadd.f32 %v465, %v1111
    %v1176 = vadd.f32 %v466, %v1112
    %v1177 = vadd.f32 %v467, %v1113
    %v1178 = vadd.f32 %v468, %v1114
    %v1179 = vadd.f32 %v469, %v1115
    %v1180 = vadd.f32 %v470, %v1116
    %v1181 = vadd.f32 %v471, %v1117
    %v1182 = vadd.f32 %v472, %v1118
    %v1183 = vadd.f32 %v473, %v1119
    %v1184 = vpack.c.bf16 %v1122, %v1120
    %v1185 = vpack.c.bf16 %v1123, %v1121
    %v1186 = vpack.c.bf16 %v1126, %v1124
    %v1187 = vpack.c.bf16 %v1127, %v1125
    %v1188 = vpack.c.bf16 %v1130, %v1128
    %v1189 = vpack.c.bf16 %v1131, %v1129
    %v1190 = vpack.c.bf16 %v1134, %v1132
    %v1191 = vpack.c.bf16 %v1135, %v1133
    %v1192 = vpack.c.bf16 %v1138, %v1136
    %v1193 = vpack.c.bf16 %v1139, %v1137
    %v1194 = vpack.c.bf16 %v1142, %v1140
    %v1195 = vpack.c.bf16 %v1143, %v1141
    %v1196 = vpack.c.bf16 %v1146, %v1144
    %v1197 = vpack.c.bf16 %v1147, %v1145
    %v1198 = vpack.c.bf16 %v1150, %v1148
    %v1199 = vpack.c.bf16 %v1151, %v1149
    %v1200 = vpack.c.bf16 %v1154, %v1152
    %v1201 = vpack.c.bf16 %v1155, %v1153
    %v1202 = vpack.c.bf16 %v1158, %v1156
    %v1203 = vpack.c.bf16 %v1159, %v1157
    %v1204 = vpack.c.bf16 %v1162, %v1160
    %v1205 = vpack.c.bf16 %v1163, %v1161
    %v1206 = vpack.c.bf16 %v1166, %v1164
    %v1207 = vpack.c.bf16 %v1167, %v1165
    %v1208 = vpack.c.bf16 %v1170, %v1168
    %v1209 = vpack.c.bf16 %v1171, %v1169
    %v1210 = vpack.c.bf16 %v1174, %v1172
    %v1211 = vpack.c.bf16 %v1175, %v1173
    %v1212 = vpack.c.bf16 %v1178, %v1176
    %v1213 = vpack.c.bf16 %v1179, %v1177
    %v1214 = vpack.c.bf16 %v1182, %v1180
    %v1215 = vpack.c.bf16 %v1183, %v1181
    %v1216 = vld [vmem:[%s3] sm:$0xf]
    %v1217 = vld [vmem:[%s3 + $0x4] sm:$0xf]
    %v1218 = vld [vmem:[%s3 + $0x8] sm:$0xf]
    %v1219 = vld [vmem:[%s3 + $0xc] sm:$0xf]
    %v1220 = vld [vmem:[%s3 + $0x10] sm:$0xf]
    %v1221 = vld [vmem:[%s3 + $0x14] sm:$0xf]
    %v1222 = vld [vmem:[%s3 + $0x18] sm:$0xf]
    %v1223 = vld [vmem:[%s3 + $0x1c] sm:$0xf]
    %v1224 = vld [vmem:[%s3 + $0x20] sm:$0xf]
    %v1225 = vld [vmem:[%s3 + $0x24] sm:$0xf]
    %v1226 = vld [vmem:[%s3 + $0x28] sm:$0xf]
    %v1227 = vld [vmem:[%s3 + $0x2c] sm:$0xf]
    %v1228 = vld [vmem:[%s3 + $0x30] sm:$0xf]
    %v1229 = vld [vmem:[%s3 + $0x34] sm:$0xf]
    %v1230 = vld [vmem:[%s3 + $0x38] sm:$0xf]
    %v1231 = vld [vmem:[%s3 + $0x3c] sm:$0xf]
    %v1232 = vld [vmem:[%s3 + $0x40] sm:$0xf]
    %v1233 = vld [vmem:[%s3 + $0x44] sm:$0xf]
    %v1234 = vld [vmem:[%s3 + $0x48] sm:$0xf]
    %v1235 = vld [vmem:[%s3 + $0x4c] sm:$0xf]
    %v1236 = vld [vmem:[%s3 + $0x50] sm:$0xf]
    %v1237 = vld [vmem:[%s3 + $0x54] sm:$0xf]
    %v1238 = vld [vmem:[%s3 + $0x58] sm:$0xf]
    %v1239 = vld [vmem:[%s3 + $0x5c] sm:$0xf]
    %v1240 = vld [vmem:[%s3 + $0x60] sm:$0xf]
    %v1241 = vld [vmem:[%s3 + $0x64] sm:$0xf]
    %v1242 = vld [vmem:[%s3 + $0x68] sm:$0xf]
    %v1243 = vld [vmem:[%s3 + $0x6c] sm:$0xf]
    %v1244 = vld [vmem:[%s3 + $0x70] sm:$0xf]
    %v1245 = vld [vmem:[%s3 + $0x74] sm:$0xf]
    %v1246 = vld [vmem:[%s3 + $0x78] sm:$0xf]
    %v1247 = vld [vmem:[%s3 + $0x7c] sm:$0xf]
    %v1248 = vperm.slane %v43, 2
    %v1281 = vunpack.c.l.b16 %v1216
    %v1282 = vunpack.c.l.b16 %v1217
    %v1283 = vunpack.c.l.b16 %v1218
    %v1284 = vunpack.c.l.b16 %v1219
    %v1285 = vunpack.c.l.b16 %v1220
    %v1286 = vunpack.c.l.b16 %v1221
    %v1287 = vunpack.c.l.b16 %v1222
    %v1288 = vunpack.c.l.b16 %v1223
    %v1289 = vunpack.c.l.b16 %v1224
    %v1290 = vunpack.c.l.b16 %v1225
    %v1291 = vunpack.c.l.b16 %v1226
    %v1292 = vunpack.c.l.b16 %v1227
    %v1293 = vunpack.c.l.b16 %v1228
    %v1294 = vunpack.c.l.b16 %v1229
    %v1295 = vunpack.c.l.b16 %v1230
    %v1296 = vunpack.c.l.b16 %v1231
    %v1297 = vunpack.c.l.b16 %v1232
    %v1298 = vunpack.c.l.b16 %v1233
    %v1299 = vunpack.c.l.b16 %v1234
    %v1300 = vunpack.c.l.b16 %v1235
    %v1301 = vunpack.c.l.b16 %v1236
    %v1302 = vunpack.c.l.b16 %v1237
    %v1303 = vunpack.c.l.b16 %v1238
    %v1304 = vunpack.c.l.b16 %v1239
    %v1305 = vunpack.c.l.b16 %v1240
    %v1306 = vunpack.c.l.b16 %v1241
    %v1307 = vunpack.c.l.b16 %v1242
    %v1308 = vunpack.c.l.b16 %v1243
    %v1309 = vunpack.c.l.b16 %v1244
    %v1310 = vunpack.c.l.b16 %v1245
    %v1311 = vunpack.c.l.b16 %v1246
    %v1312 = vunpack.c.l.b16 %v1247
    %v1313 = vpack.c.b16 %v1282, %v1281
    %v1314 = vpack.c.b16 %v1284, %v1283
    %v1315 = vpack.c.b16 %v1286, %v1285
    %v1316 = vpack.c.b16 %v1288, %v1287
    %v1317 = vpack.c.b16 %v1290, %v1289
    %v1318 = vpack.c.b16 %v1292, %v1291
    %v1319 = vpack.c.b16 %v1294, %v1293
    %v1320 = vpack.c.b16 %v1296, %v1295
    %v1321 = vpack.c.b16 %v1298, %v1297
    %v1322 = vpack.c.b16 %v1300, %v1299
    %v1323 = vpack.c.b16 %v1302, %v1301
    %v1324 = vpack.c.b16 %v1304, %v1303
    %v1325 = vpack.c.b16 %v1306, %v1305
    %v1326 = vpack.c.b16 %v1308, %v1307
    %v1327 = vpack.c.b16 %v1310, %v1309
    %v1328 = vpack.c.b16 %v1312, %v1311
    %1345 = vmatpush.bf16.msra.mxu0 %v1320
    %1346 = vmatpush.bf16.msra.mxu0 %v1319
    %1347 = vmatpush.bf16.msra.mxu0 %v1318
    %1348 = vmatpush.bf16.msra.mxu0 %v1317
    %1349 = vmatpush.bf16.msra.mxu0 %v1316
    %1350 = vmatpush.bf16.msra.mxu0 %v1315
    %1351 = vmatpush.bf16.msra.mxu0 %v1314
    %1352 = vmatpush.bf16.msra.mxu0 %v1313
    %1353 = vmatmul.bf16.gmra.mxu0 %v1184
    %v1354 = vpop.f32.mrf.mxu0
    %v1355 = vadd.f32 %v1248, %v1354
    %v1356 = vpop.f32.mrf.mxu0
    %v1357 = vadd.f32 %v1248, %v1356
    %1358 = vmatmul.bf16.gmra.mxu0 %v1186
    %v1359 = vpop.f32.mrf.mxu0
    %v1360 = vadd.f32 %v1248, %v1359
    %v1361 = vpop.f32.mrf.mxu0
    %v1362 = vadd.f32 %v1248, %v1361
    %1363 = vmatmul.bf16.gmra.mxu0 %v1188
    %v1364 = vpop.f32.mrf.mxu0
    %v1365 = vadd.f32 %v1248, %v1364
    %v1366 = vpop.f32.mrf.mxu0
    %v1367 = vadd.f32 %v1248, %v1366
    %1368 = vmatmul.bf16.gmra.mxu0 %v1190
    %v1369 = vpop.f32.mrf.mxu0
    %v1370 = vadd.f32 %v1248, %v1369
    %v1371 = vpop.f32.mrf.mxu0
    %v1372 = vadd.f32 %v1248, %v1371
    %1373 = vmatmul.bf16.gmra.mxu0 %v1192
    %v1374 = vpop.f32.mrf.mxu0
    %v1375 = vadd.f32 %v1248, %v1374
    %v1376 = vpop.f32.mrf.mxu0
    %v1377 = vadd.f32 %v1248, %v1376
    %1378 = vmatmul.bf16.gmra.mxu0 %v1194
    %v1379 = vpop.f32.mrf.mxu0
    %v1380 = vadd.f32 %v1248, %v1379
    %v1381 = vpop.f32.mrf.mxu0
    %v1382 = vadd.f32 %v1248, %v1381
    %1383 = vmatmul.bf16.gmra.mxu0 %v1196
    %v1384 = vpop.f32.mrf.mxu0
    %v1385 = vadd.f32 %v1248, %v1384
    %v1386 = vpop.f32.mrf.mxu0
    %v1387 = vadd.f32 %v1248, %v1386
    %1388 = vmatmul.bf16.gmra.mxu0 %v1198
    %v1389 = vpop.f32.mrf.mxu0
    %v1390 = vadd.f32 %v1248, %v1389
    %v1391 = vpop.f32.mrf.mxu0
    %v1392 = vadd.f32 %v1248, %v1391
    %1393 = vmatmul.bf16.gmra.mxu0 %v1200
    %v1394 = vpop.f32.mrf.mxu0
    %v1395 = vadd.f32 %v1248, %v1394
    %v1396 = vpop.f32.mrf.mxu0
    %v1397 = vadd.f32 %v1248, %v1396
    %1398 = vmatmul.bf16.gmra.mxu0 %v1202
    %v1399 = vpop.f32.mrf.mxu0
    %v1400 = vadd.f32 %v1248, %v1399
    %v1401 = vpop.f32.mrf.mxu0
    %v1402 = vadd.f32 %v1248, %v1401
    %1403 = vmatmul.bf16.gmra.mxu0 %v1204
    %v1404 = vpop.f32.mrf.mxu0
    %v1405 = vadd.f32 %v1248, %v1404
    %v1406 = vpop.f32.mrf.mxu0
    %v1407 = vadd.f32 %v1248, %v1406
    %1408 = vmatmul.bf16.gmra.mxu0 %v1206
    %v1409 = vpop.f32.mrf.mxu0
    %v1410 = vadd.f32 %v1248, %v1409
    %v1411 = vpop.f32.mrf.mxu0
    %v1412 = vadd.f32 %v1248, %v1411
    %1413 = vmatmul.bf16.gmra.mxu0 %v1208
    %v1414 = vpop.f32.mrf.mxu0
    %v1415 = vadd.f32 %v1248, %v1414
    %v1416 = vpop.f32.mrf.mxu0
    %v1417 = vadd.f32 %v1248, %v1416
    %1418 = vmatmul.bf16.gmra.mxu0 %v1210
    %v1419 = vpop.f32.mrf.mxu0
    %v1420 = vadd.f32 %v1248, %v1419
    %v1421 = vpop.f32.mrf.mxu0
    %v1422 = vadd.f32 %v1248, %v1421
    %1423 = vmatmul.bf16.gmra.mxu0 %v1212
    %v1424 = vpop.f32.mrf.mxu0
    %v1425 = vadd.f32 %v1248, %v1424
    %v1426 = vpop.f32.mrf.mxu0
    %v1427 = vadd.f32 %v1248, %v1426
    %1428 = vmatmul.bf16.gmra.mxu0 %v1214
    %v1429 = vpop.f32.mrf.mxu0
    %v1430 = vadd.f32 %v1248, %v1429
    %v1431 = vpop.f32.mrf.mxu0
    %v1432 = vadd.f32 %v1248, %v1431
    %1433 = vdwg.mxu0
    %1434 = vmatpush.bf16.msra.mxu0 %v1328
    %1435 = vmatpush.bf16.msra.mxu0 %v1327
    %1436 = vmatpush.bf16.msra.mxu0 %v1326
    %1437 = vmatpush.bf16.msra.mxu0 %v1325
    %1438 = vmatpush.bf16.msra.mxu0 %v1324
    %1439 = vmatpush.bf16.msra.mxu0 %v1323
    %1440 = vmatpush.bf16.msra.mxu0 %v1322
    %1441 = vmatpush.bf16.msra.mxu0 %v1321
    %1442 = vmatmul.bf16.gmra.mxu0 %v1185
    %v1443 = vpop.f32.mrf.mxu0
    %v1444 = vadd.f32 %v1355, %v1443
    %v1445 = vpop.f32.mrf.mxu0
    %v1446 = vadd.f32 %v1357, %v1445
    %1447 = vmatmul.bf16.gmra.mxu0 %v1187
    %v1448 = vpop.f32.mrf.mxu0
    %v1449 = vadd.f32 %v1360, %v1448
    %v1450 = vpop.f32.mrf.mxu0
    %v1451 = vadd.f32 %v1362, %v1450
    %1452 = vmatmul.bf16.gmra.mxu0 %v1189
    %v1453 = vpop.f32.mrf.mxu0
    %v1454 = vadd.f32 %v1365, %v1453
    %v1455 = vpop.f32.mrf.mxu0
    %v1456 = vadd.f32 %v1367, %v1455
    %1457 = vmatmul.bf16.gmra.mxu0 %v1191
    %v1458 = vpop.f32.mrf.mxu0
    %v1459 = vadd.f32 %v1370, %v1458
    %v1460 = vpop.f32.mrf.mxu0
    %v1461 = vadd.f32 %v1372, %v1460
    %1462 = vmatmul.bf16.gmra.mxu0 %v1193
    %v1463 = vpop.f32.mrf.mxu0
    %v1464 = vadd.f32 %v1375, %v1463
    %v1465 = vpop.f32.mrf.mxu0
    %v1466 = vadd.f32 %v1377, %v1465
    %1467 = vmatmul.bf16.gmra.mxu0 %v1195
    %v1468 = vpop.f32.mrf.mxu0
    %v1469 = vadd.f32 %v1380, %v1468
    %v1470 = vpop.f32.mrf.mxu0
    %v1471 = vadd.f32 %v1382, %v1470
    %1472 = vmatmul.bf16.gmra.mxu0 %v1197
    %v1473 = vpop.f32.mrf.mxu0
    %v1474 = vadd.f32 %v1385, %v1473
    %v1475 = vpop.f32.mrf.mxu0
    %v1476 = vadd.f32 %v1387, %v1475
    %1477 = vmatmul.bf16.gmra.mxu0 %v1199
    %v1478 = vpop.f32.mrf.mxu0
    %v1479 = vadd.f32 %v1390, %v1478
    %v1480 = vpop.f32.mrf.mxu0
    %v1481 = vadd.f32 %v1392, %v1480
    %1482 = vmatmul.bf16.gmra.mxu0 %v1201
    %v1483 = vpop.f32.mrf.mxu0
    %v1484 = vadd.f32 %v1395, %v1483
    %v1485 = vpop.f32.mrf.mxu0
    %v1486 = vadd.f32 %v1397, %v1485
    %1487 = vmatmul.bf16.gmra.mxu0 %v1203
    %v1488 = vpop.f32.mrf.mxu0
    %v1489 = vadd.f32 %v1400, %v1488
    %v1490 = vpop.f32.mrf.mxu0
    %v1491 = vadd.f32 %v1402, %v1490
    %1492 = vmatmul.bf16.gmra.mxu0 %v1205
    %v1493 = vpop.f32.mrf.mxu0
    %v1494 = vadd.f32 %v1405, %v1493
    %v1495 = vpop.f32.mrf.mxu0
    %v1496 = vadd.f32 %v1407, %v1495
    %1497 = vmatmul.bf16.gmra.mxu0 %v1207
    %v1498 = vpop.f32.mrf.mxu0
    %v1499 = vadd.f32 %v1410, %v1498
    %v1500 = vpop.f32.mrf.mxu0
    %v1501 = vadd.f32 %v1412, %v1500
    %1502 = vmatmul.bf16.gmra.mxu0 %v1209
    %v1503 = vpop.f32.mrf.mxu0
    %v1504 = vadd.f32 %v1415, %v1503
    %v1505 = vpop.f32.mrf.mxu0
    %v1506 = vadd.f32 %v1417, %v1505
    %1507 = vmatmul.bf16.gmra.mxu0 %v1211
    %v1508 = vpop.f32.mrf.mxu0
    %v1509 = vadd.f32 %v1420, %v1508
    %v1510 = vpop.f32.mrf.mxu0
    %v1511 = vadd.f32 %v1422, %v1510
    %1512 = vmatmul.bf16.gmra.mxu0 %v1213
    %v1513 = vpop.f32.mrf.mxu0
    %v1514 = vadd.f32 %v1425, %v1513
    %v1515 = vpop.f32.mrf.mxu0
    %v1516 = vadd.f32 %v1427, %v1515
    %1517 = vmatmul.bf16.gmra.mxu0 %v1215
    %v1518 = vpop.f32.mrf.mxu0
    %v1519 = vadd.f32 %v1430, %v1518
    %v1520 = vpop.f32.mrf.mxu0
    %v1521 = vadd.f32 %v1432, %v1520
    %1522 = vdwg.mxu0
    %v1523 = vmax.f32 %v1444, 0.0
    %v1524 = vmax.f32 %v1446, 0.0
    %v1525 = vmax.f32 %v1449, 0.0
    %v1526 = vmax.f32 %v1451, 0.0
    %v1527 = vmax.f32 %v1454, 0.0
    %v1528 = vmax.f32 %v1456, 0.0
    %v1529 = vmax.f32 %v1459, 0.0
    %v1530 = vmax.f32 %v1461, 0.0
    %v1531 = vmax.f32 %v1464, 0.0
    %v1532 = vmax.f32 %v1466, 0.0
    %v1533 = vmax.f32 %v1469, 0.0
    %v1534 = vmax.f32 %v1471, 0.0
    %v1535 = vmax.f32 %v1474, 0.0
    %v1536 = vmax.f32 %v1476, 0.0
    %v1537 = vmax.f32 %v1479, 0.0
    %v1538 = vmax.f32 %v1481, 0.0
    %v1539 = vmax.f32 %v1484, 0.0
    %v1540 = vmax.f32 %v1486, 0.0
    %v1541 = vmax.f32 %v1489, 0.0
    %v1542 = vmax.f32 %v1491, 0.0
    %v1543 = vmax.f32 %v1494, 0.0
    %v1544 = vmax.f32 %v1496, 0.0
    %v1545 = vmax.f32 %v1499, 0.0
    %v1546 = vmax.f32 %v1501, 0.0
    %v1547 = vmax.f32 %v1504, 0.0
    %v1548 = vmax.f32 %v1506, 0.0
    %v1549 = vmax.f32 %v1509, 0.0
    %v1550 = vmax.f32 %v1511, 0.0
    %v1551 = vmax.f32 %v1514, 0.0
    %v1552 = vmax.f32 %v1516, 0.0
    %v1553 = vmax.f32 %v1519, 0.0
    %v1554 = vmax.f32 %v1521, 0.0
    %v1555 = vpack.c.bf16 %v1524, %v1523
    %v1556 = vpack.c.bf16 %v1526, %v1525
    %v1557 = vpack.c.bf16 %v1528, %v1527
    %v1558 = vpack.c.bf16 %v1530, %v1529
    %v1559 = vpack.c.bf16 %v1532, %v1531
    %v1560 = vpack.c.bf16 %v1534, %v1533
    %v1561 = vpack.c.bf16 %v1536, %v1535
    %v1562 = vpack.c.bf16 %v1538, %v1537
    %v1563 = vpack.c.bf16 %v1540, %v1539
    %v1564 = vpack.c.bf16 %v1542, %v1541
    %v1565 = vpack.c.bf16 %v1544, %v1543
    %v1566 = vpack.c.bf16 %v1546, %v1545
    %v1567 = vpack.c.bf16 %v1548, %v1547
    %v1568 = vpack.c.bf16 %v1550, %v1549
    %v1569 = vpack.c.bf16 %v1552, %v1551
    %v1570 = vpack.c.bf16 %v1554, %v1553
    %v1571 = vld [vmem:[%s4] sm:$0xf]
    %v1572 = vld [vmem:[%s4 + $0x4] sm:$0xf]
    %v1573 = vld [vmem:[%s4 + $0x8] sm:$0xf]
    %v1574 = vld [vmem:[%s4 + $0xc] sm:$0xf]
    %v1575 = vld [vmem:[%s4 + $0x10] sm:$0xf]
    %v1576 = vld [vmem:[%s4 + $0x14] sm:$0xf]
    %v1577 = vld [vmem:[%s4 + $0x18] sm:$0xf]
    %v1578 = vld [vmem:[%s4 + $0x1c] sm:$0xf]
    %v1579 = vld [vmem:[%s4 + $0x20] sm:$0xf]
    %v1580 = vld [vmem:[%s4 + $0x24] sm:$0xf]
    %v1581 = vld [vmem:[%s4 + $0x28] sm:$0xf]
    %v1582 = vld [vmem:[%s4 + $0x2c] sm:$0xf]
    %v1583 = vld [vmem:[%s4 + $0x30] sm:$0xf]
    %v1584 = vld [vmem:[%s4 + $0x34] sm:$0xf]
    %v1585 = vld [vmem:[%s4 + $0x38] sm:$0xf]
    %v1586 = vld [vmem:[%s4 + $0x3c] sm:$0xf]
    %v1587 = vperm.slane %v43, 3
    %v1604 = vunpack.c.l.b16 %v1571
    %v1605 = vunpack.c.l.b16 %v1572
    %v1606 = vunpack.c.l.b16 %v1573
    %v1607 = vunpack.c.l.b16 %v1574
    %v1608 = vunpack.c.l.b16 %v1575
    %v1609 = vunpack.c.l.b16 %v1576
    %v1610 = vunpack.c.l.b16 %v1577
    %v1611 = vunpack.c.l.b16 %v1578
    %v1612 = vunpack.c.l.b16 %v1579
    %v1613 = vunpack.c.l.b16 %v1580
    %v1614 = vunpack.c.l.b16 %v1581
    %v1615 = vunpack.c.l.b16 %v1582
    %v1616 = vunpack.c.l.b16 %v1583
    %v1617 = vunpack.c.l.b16 %v1584
    %v1618 = vunpack.c.l.b16 %v1585
    %v1619 = vunpack.c.l.b16 %v1586
    %v1620 = vpack.c.b16 %v1605, %v1604
    %v1621 = vpack.c.b16 %v1607, %v1606
    %v1622 = vpack.c.b16 %v1609, %v1608
    %v1623 = vpack.c.b16 %v1611, %v1610
    %v1624 = vpack.c.b16 %v1613, %v1612
    %v1625 = vpack.c.b16 %v1615, %v1614
    %v1626 = vpack.c.b16 %v1617, %v1616
    %v1627 = vpack.c.b16 %v1619, %v1618
    %1636 = vmatpush.bf16.msra.mxu0 %v1627
    %1637 = vmatpush.bf16.msra.mxu0 %v1626
    %1638 = vmatpush.bf16.msra.mxu0 %v1625
    %1639 = vmatpush.bf16.msra.mxu0 %v1624
    %1640 = vmatpush.bf16.msra.mxu0 %v1623
    %1641 = vmatpush.bf16.msra.mxu0 %v1622
    %1642 = vmatpush.bf16.msra.mxu0 %v1621
    %1643 = vmatpush.bf16.msra.mxu0 %v1620
    %1644 = vmatmul.bf16.gmra.mxu0 %v1555
    %v1645 = vpop.f32.mrf.mxu0
    %v1646 = vadd.f32 %v1587, %v1645
    %v1647 = vpop.f32.mrf.mxu0
    %v1648 = vadd.f32 %v1587, %v1647
    %1649 = vmatmul.bf16.gmra.mxu0 %v1556
    %v1650 = vpop.f32.mrf.mxu0
    %v1651 = vadd.f32 %v1587, %v1650
    %v1652 = vpop.f32.mrf.mxu0
    %v1653 = vadd.f32 %v1587, %v1652
    %1654 = vmatmul.bf16.gmra.mxu0 %v1557
    %v1655 = vpop.f32.mrf.mxu0
    %v1656 = vadd.f32 %v1587, %v1655
    %v1657 = vpop.f32.mrf.mxu0
    %v1658 = vadd.f32 %v1587, %v1657
    %1659 = vmatmul.bf16.gmra.mxu0 %v1558
    %v1660 = vpop.f32.mrf.mxu0
    %v1661 = vadd.f32 %v1587, %v1660
    %v1662 = vpop.f32.mrf.mxu0
    %v1663 = vadd.f32 %v1587, %v1662
    %1664 = vmatmul.bf16.gmra.mxu0 %v1559
    %v1665 = vpop.f32.mrf.mxu0
    %v1666 = vadd.f32 %v1587, %v1665
    %v1667 = vpop.f32.mrf.mxu0
    %v1668 = vadd.f32 %v1587, %v1667
    %1669 = vmatmul.bf16.gmra.mxu0 %v1560
    %v1670 = vpop.f32.mrf.mxu0
    %v1671 = vadd.f32 %v1587, %v1670
    %v1672 = vpop.f32.mrf.mxu0
    %v1673 = vadd.f32 %v1587, %v1672
    %1674 = vmatmul.bf16.gmra.mxu0 %v1561
    %v1675 = vpop.f32.mrf.mxu0
    %v1676 = vadd.f32 %v1587, %v1675
    %v1677 = vpop.f32.mrf.mxu0
    %v1678 = vadd.f32 %v1587, %v1677
    %1679 = vmatmul.bf16.gmra.mxu0 %v1562
    %v1680 = vpop.f32.mrf.mxu0
    %v1681 = vadd.f32 %v1587, %v1680
    %v1682 = vpop.f32.mrf.mxu0
    %v1683 = vadd.f32 %v1587, %v1682
    %1684 = vmatmul.bf16.gmra.mxu0 %v1563
    %v1685 = vpop.f32.mrf.mxu0
    %v1686 = vadd.f32 %v1587, %v1685
    %v1687 = vpop.f32.mrf.mxu0
    %v1688 = vadd.f32 %v1587, %v1687
    %1689 = vmatmul.bf16.gmra.mxu0 %v1564
    %v1690 = vpop.f32.mrf.mxu0
    %v1691 = vadd.f32 %v1587, %v1690
    %v1692 = vpop.f32.mrf.mxu0
    %v1693 = vadd.f32 %v1587, %v1692
    %1694 = vmatmul.bf16.gmra.mxu0 %v1565
    %v1695 = vpop.f32.mrf.mxu0
    %v1696 = vadd.f32 %v1587, %v1695
    %v1697 = vpop.f32.mrf.mxu0
    %v1698 = vadd.f32 %v1587, %v1697
    %1699 = vmatmul.bf16.gmra.mxu0 %v1566
    %v1700 = vpop.f32.mrf.mxu0
    %v1701 = vadd.f32 %v1587, %v1700
    %v1702 = vpop.f32.mrf.mxu0
    %v1703 = vadd.f32 %v1587, %v1702
    %1704 = vmatmul.bf16.gmra.mxu0 %v1567
    %v1705 = vpop.f32.mrf.mxu0
    %v1706 = vadd.f32 %v1587, %v1705
    %v1707 = vpop.f32.mrf.mxu0
    %v1708 = vadd.f32 %v1587, %v1707
    %1709 = vmatmul.bf16.gmra.mxu0 %v1568
    %v1710 = vpop.f32.mrf.mxu0
    %v1711 = vadd.f32 %v1587, %v1710
    %v1712 = vpop.f32.mrf.mxu0
    %v1713 = vadd.f32 %v1587, %v1712
    %1714 = vmatmul.bf16.gmra.mxu0 %v1569
    %v1715 = vpop.f32.mrf.mxu0
    %v1716 = vadd.f32 %v1587, %v1715
    %v1717 = vpop.f32.mrf.mxu0
    %v1718 = vadd.f32 %v1587, %v1717
    %1719 = vmatmul.bf16.gmra.mxu0 %v1570
    %v1720 = vpop.f32.mrf.mxu0
    %v1721 = vadd.f32 %v1587, %v1720
    %v1722 = vpop.f32.mrf.mxu0
    %v1723 = vadd.f32 %v1587, %v1722
    %1724 = vdwg.mxu0
    %v1725 = vmax.f32 %v1646, 0.0
    %v1726 = vmax.f32 %v1648, 0.0
    %v1727 = vmax.f32 %v1651, 0.0
    %v1728 = vmax.f32 %v1653, 0.0
    %v1729 = vmax.f32 %v1656, 0.0
    %v1730 = vmax.f32 %v1658, 0.0
    %v1731 = vmax.f32 %v1661, 0.0
    %v1732 = vmax.f32 %v1663, 0.0
    %v1733 = vmax.f32 %v1666, 0.0
    %v1734 = vmax.f32 %v1668, 0.0
    %v1735 = vmax.f32 %v1671, 0.0
    %v1736 = vmax.f32 %v1673, 0.0
    %v1737 = vmax.f32 %v1676, 0.0
    %v1738 = vmax.f32 %v1678, 0.0
    %v1739 = vmax.f32 %v1681, 0.0
    %v1740 = vmax.f32 %v1683, 0.0
    %v1741 = vmax.f32 %v1686, 0.0
    %v1742 = vmax.f32 %v1688, 0.0
    %v1743 = vmax.f32 %v1691, 0.0
    %v1744 = vmax.f32 %v1693, 0.0
    %v1745 = vmax.f32 %v1696, 0.0
    %v1746 = vmax.f32 %v1698, 0.0
    %v1747 = vmax.f32 %v1701, 0.0
    %v1748 = vmax.f32 %v1703, 0.0
    %v1749 = vmax.f32 %v1706, 0.0
    %v1750 = vmax.f32 %v1708, 0.0
    %v1751 = vmax.f32 %v1711, 0.0
    %v1752 = vmax.f32 %v1713, 0.0
    %v1753 = vmax.f32 %v1716, 0.0
    %v1754 = vmax.f32 %v1718, 0.0
    %v1755 = vmax.f32 %v1721, 0.0
    %v1756 = vmax.f32 %v1723, 0.0
    %v1757 = vpack.c.bf16 %v1726, %v1725
    %v1758 = vpack.c.bf16 %v1728, %v1727
    %v1759 = vpack.c.bf16 %v1730, %v1729
    %v1760 = vpack.c.bf16 %v1732, %v1731
    %v1761 = vpack.c.bf16 %v1734, %v1733
    %v1762 = vpack.c.bf16 %v1736, %v1735
    %v1763 = vpack.c.bf16 %v1738, %v1737
    %v1764 = vpack.c.bf16 %v1740, %v1739
    %v1765 = vpack.c.bf16 %v1742, %v1741
    %v1766 = vpack.c.bf16 %v1744, %v1743
    %v1767 = vpack.c.bf16 %v1746, %v1745
    %v1768 = vpack.c.bf16 %v1748, %v1747
    %v1769 = vpack.c.bf16 %v1750, %v1749
    %v1770 = vpack.c.bf16 %v1752, %v1751
    %v1771 = vpack.c.bf16 %v1754, %v1753
    %v1772 = vpack.c.bf16 %v1756, %v1755
    %v1773 = vld [vmem:[%s5] sm:$0xf]
    %v1774 = vld [vmem:[%s5 + $0x4] sm:$0xf]
    %v1775 = vld [vmem:[%s5 + $0x8] sm:$0xf]
    %v1776 = vld [vmem:[%s5 + $0xc] sm:$0xf]
    %v1777 = vld [vmem:[%s5 + $0x10] sm:$0xf]
    %v1778 = vld [vmem:[%s5 + $0x14] sm:$0xf]
    %v1779 = vld [vmem:[%s5 + $0x18] sm:$0xf]
    %v1780 = vld [vmem:[%s5 + $0x1c] sm:$0xf]
    %v1781 = vperm.slane %v43, 4
    %v1790 = vunpack.c.l.b16 %v1773
    %v1791 = vunpack.c.l.b16 %v1774
    %v1792 = vunpack.c.l.b16 %v1775
    %v1793 = vunpack.c.l.b16 %v1776
    %v1794 = vunpack.c.l.b16 %v1777
    %v1795 = vunpack.c.l.b16 %v1778
    %v1796 = vunpack.c.l.b16 %v1779
    %v1797 = vunpack.c.l.b16 %v1780
    %v1798 = vpack.c.b16 %v1791, %v1790
    %v1799 = vpack.c.b16 %v1793, %v1792
    %v1800 = vpack.c.b16 %v1795, %v1794
    %v1801 = vpack.c.b16 %v1797, %v1796
    %vm1806 = vcmask 523264
    %v1808 = vsel %vm1806, %v1757, 0
    %v1811 = vsel %vm1806, %v1758, 0
    %v1814 = vsel %vm1806, %v1759, 0
    %v1817 = vsel %vm1806, %v1760, 0
    %v1820 = vsel %vm1806, %v1761, 0
    %v1823 = vsel %vm1806, %v1762, 0
    %v1826 = vsel %vm1806, %v1763, 0
    %v1829 = vsel %vm1806, %v1764, 0
    %v1832 = vsel %vm1806, %v1765, 0
    %v1835 = vsel %vm1806, %v1766, 0
    %v1838 = vsel %vm1806, %v1767, 0
    %v1841 = vsel %vm1806, %v1768, 0
    %v1844 = vsel %vm1806, %v1769, 0
    %v1847 = vsel %vm1806, %v1770, 0
    %v1850 = vsel %vm1806, %v1771, 0
    %v1853 = vsel %vm1806, %v1772, 0
    %1855 = vmatpush.bf16.msra.mxu0 0
    %1856 = vmatpush.bf16.msra.mxu0 0
    %1857 = vmatpush.bf16.msra.mxu0 0
    %1858 = vmatpush.bf16.msra.mxu0 0
    %1859 = vmatpush.bf16.msra.mxu0 %v1801
    %1860 = vmatpush.bf16.msra.mxu0 %v1800
    %1861 = vmatpush.bf16.msra.mxu0 %v1799
    %1862 = vmatpush.bf16.msra.mxu0 %v1798
    %1863 = vmatmul.bf16.gmra.mxu0 %v1808
    %v1864 = vpop.f32.mrf.mxu0
    %v1865 = vadd.f32 %v1781, %v1864
    %v1866 = vpop.f32.mrf.mxu0
    %v1867 = vadd.f32 %v1781, %v1866
    %1868 = vmatmul.bf16.gmra.mxu0 %v1811
    %v1869 = vpop.f32.mrf.mxu0
    %v1870 = vadd.f32 %v1781, %v1869
    %v1871 = vpop.f32.mrf.mxu0
    %v1872 = vadd.f32 %v1781, %v1871
    %1873 = vmatmul.bf16.gmra.mxu0 %v1814
    %v1874 = vpop.f32.mrf.mxu0
    %v1875 = vadd.f32 %v1781, %v1874
    %v1876 = vpop.f32.mrf.mxu0
    %v1877 = vadd.f32 %v1781, %v1876
    %1878 = vmatmul.bf16.gmra.mxu0 %v1817
    %v1879 = vpop.f32.mrf.mxu0
    %v1880 = vadd.f32 %v1781, %v1879
    %v1881 = vpop.f32.mrf.mxu0
    %v1882 = vadd.f32 %v1781, %v1881
    %1883 = vmatmul.bf16.gmra.mxu0 %v1820
    %v1884 = vpop.f32.mrf.mxu0
    %v1885 = vadd.f32 %v1781, %v1884
    %v1886 = vpop.f32.mrf.mxu0
    %v1887 = vadd.f32 %v1781, %v1886
    %1888 = vmatmul.bf16.gmra.mxu0 %v1823
    %v1889 = vpop.f32.mrf.mxu0
    %v1890 = vadd.f32 %v1781, %v1889
    %v1891 = vpop.f32.mrf.mxu0
    %v1892 = vadd.f32 %v1781, %v1891
    %1893 = vmatmul.bf16.gmra.mxu0 %v1826
    %v1894 = vpop.f32.mrf.mxu0
    %v1895 = vadd.f32 %v1781, %v1894
    %v1896 = vpop.f32.mrf.mxu0
    %v1897 = vadd.f32 %v1781, %v1896
    %1898 = vmatmul.bf16.gmra.mxu0 %v1829
    %v1899 = vpop.f32.mrf.mxu0
    %v1900 = vadd.f32 %v1781, %v1899
    %v1901 = vpop.f32.mrf.mxu0
    %v1902 = vadd.f32 %v1781, %v1901
    %1903 = vmatmul.bf16.gmra.mxu0 %v1832
    %v1904 = vpop.f32.mrf.mxu0
    %v1905 = vadd.f32 %v1781, %v1904
    %v1906 = vpop.f32.mrf.mxu0
    %v1907 = vadd.f32 %v1781, %v1906
    %1908 = vmatmul.bf16.gmra.mxu0 %v1835
    %v1909 = vpop.f32.mrf.mxu0
    %v1910 = vadd.f32 %v1781, %v1909
    %v1911 = vpop.f32.mrf.mxu0
    %v1912 = vadd.f32 %v1781, %v1911
    %1913 = vmatmul.bf16.gmra.mxu0 %v1838
    %v1914 = vpop.f32.mrf.mxu0
    %v1915 = vadd.f32 %v1781, %v1914
    %v1916 = vpop.f32.mrf.mxu0
    %v1917 = vadd.f32 %v1781, %v1916
    %1918 = vmatmul.bf16.gmra.mxu0 %v1841
    %v1919 = vpop.f32.mrf.mxu0
    %v1920 = vadd.f32 %v1781, %v1919
    %v1921 = vpop.f32.mrf.mxu0
    %v1922 = vadd.f32 %v1781, %v1921
    %1923 = vmatmul.bf16.gmra.mxu0 %v1844
    %v1924 = vpop.f32.mrf.mxu0
    %v1925 = vadd.f32 %v1781, %v1924
    %v1926 = vpop.f32.mrf.mxu0
    %v1927 = vadd.f32 %v1781, %v1926
    %1928 = vmatmul.bf16.gmra.mxu0 %v1847
    %v1929 = vpop.f32.mrf.mxu0
    %v1930 = vadd.f32 %v1781, %v1929
    %v1931 = vpop.f32.mrf.mxu0
    %v1932 = vadd.f32 %v1781, %v1931
    %1933 = vmatmul.bf16.gmra.mxu0 %v1850
    %v1934 = vpop.f32.mrf.mxu0
    %v1935 = vadd.f32 %v1781, %v1934
    %v1936 = vpop.f32.mrf.mxu0
    %v1937 = vadd.f32 %v1781, %v1936
    %1938 = vmatmul.bf16.gmra.mxu0 %v1853
    %v1939 = vpop.f32.mrf.mxu0
    %v1940 = vadd.f32 %v1781, %v1939
    %v1941 = vpop.f32.mrf.mxu0
    %v1942 = vadd.f32 %v1781, %v1941
    %1943 = vdwg.mxu0
    %v1944 = vmax.f32 %v1865, 0.0
    %v1945 = vmax.f32 %v1867, 0.0
    %v1946 = vmax.f32 %v1870, 0.0
    %v1947 = vmax.f32 %v1872, 0.0
    %v1948 = vmax.f32 %v1875, 0.0
    %v1949 = vmax.f32 %v1877, 0.0
    %v1950 = vmax.f32 %v1880, 0.0
    %v1951 = vmax.f32 %v1882, 0.0
    %v1952 = vmax.f32 %v1885, 0.0
    %v1953 = vmax.f32 %v1887, 0.0
    %v1954 = vmax.f32 %v1890, 0.0
    %v1955 = vmax.f32 %v1892, 0.0
    %v1956 = vmax.f32 %v1895, 0.0
    %v1957 = vmax.f32 %v1897, 0.0
    %v1958 = vmax.f32 %v1900, 0.0
    %v1959 = vmax.f32 %v1902, 0.0
    %v1960 = vmax.f32 %v1905, 0.0
    %v1961 = vmax.f32 %v1907, 0.0
    %v1962 = vmax.f32 %v1910, 0.0
    %v1963 = vmax.f32 %v1912, 0.0
    %v1964 = vmax.f32 %v1915, 0.0
    %v1965 = vmax.f32 %v1917, 0.0
    %v1966 = vmax.f32 %v1920, 0.0
    %v1967 = vmax.f32 %v1922, 0.0
    %v1968 = vmax.f32 %v1925, 0.0
    %v1969 = vmax.f32 %v1927, 0.0
    %v1970 = vmax.f32 %v1930, 0.0
    %v1971 = vmax.f32 %v1932, 0.0
    %v1972 = vmax.f32 %v1935, 0.0
    %v1973 = vmax.f32 %v1937, 0.0
    %v1974 = vmax.f32 %v1940, 0.0
    %v1975 = vmax.f32 %v1942, 0.0
    %v1976 = vperm.slane %v43, 5
    %v1977 = vmul.f32 %v1944, %v1976
    %v1978 = vmul.f32 %v1945, %v1976
    %v1979 = vmul.f32 %v1946, %v1976
    %v1980 = vmul.f32 %v1947, %v1976
    %v1981 = vmul.f32 %v1948, %v1976
    %v1982 = vmul.f32 %v1949, %v1976
    %v1983 = vmul.f32 %v1950, %v1976
    %v1984 = vmul.f32 %v1951, %v1976
    %v1985 = vmul.f32 %v1952, %v1976
    %v1986 = vmul.f32 %v1953, %v1976
    %v1987 = vmul.f32 %v1954, %v1976
    %v1988 = vmul.f32 %v1955, %v1976
    %v1989 = vmul.f32 %v1956, %v1976
    %v1990 = vmul.f32 %v1957, %v1976
    %v1991 = vmul.f32 %v1958, %v1976
    %v1992 = vmul.f32 %v1959, %v1976
    %v1993 = vmul.f32 %v1960, %v1976
    %v1994 = vmul.f32 %v1961, %v1976
    %v1995 = vmul.f32 %v1962, %v1976
    %v1996 = vmul.f32 %v1963, %v1976
    %v1997 = vmul.f32 %v1964, %v1976
    %v1998 = vmul.f32 %v1965, %v1976
    %v1999 = vmul.f32 %v1966, %v1976
    %v2000 = vmul.f32 %v1967, %v1976
    %v2001 = vmul.f32 %v1968, %v1976
    %v2002 = vmul.f32 %v1969, %v1976
    %v2003 = vmul.f32 %v1970, %v1976
    %v2004 = vmul.f32 %v1971, %v1976
    %v2005 = vmul.f32 %v1972, %v1976
    %v2006 = vmul.f32 %v1973, %v1976
    %v2007 = vmul.f32 %v1974, %v1976
    %v2008 = vmul.f32 %v1975, %v1976
    %v2009 = vsel %vm183, %v1977, 0.0
    %2010 = vadd.xlane.f32.xlu0 %v2009
    %v2011 = vpop.xlane.xlu0 %2010
    %v2012 = vsel %vm183, %v1978, 0.0
    %2013 = vadd.xlane.f32.xlu0 %v2012
    %v2014 = vpop.xlane.xlu0 %2013
    %v2015 = vsel %vm183, %v1979, 0.0
    %2016 = vadd.xlane.f32.xlu0 %v2015
    %v2017 = vpop.xlane.xlu0 %2016
    %v2018 = vsel %vm183, %v1980, 0.0
    %2019 = vadd.xlane.f32.xlu0 %v2018
    %v2020 = vpop.xlane.xlu0 %2019
    %v2021 = vsel %vm183, %v1981, 0.0
    %2022 = vadd.xlane.f32.xlu0 %v2021
    %v2023 = vpop.xlane.xlu0 %2022
    %v2024 = vsel %vm183, %v1982, 0.0
    %2025 = vadd.xlane.f32.xlu0 %v2024
    %v2026 = vpop.xlane.xlu0 %2025
    %v2027 = vsel %vm183, %v1983, 0.0
    %2028 = vadd.xlane.f32.xlu0 %v2027
    %v2029 = vpop.xlane.xlu0 %2028
    %v2030 = vsel %vm183, %v1984, 0.0
    %2031 = vadd.xlane.f32.xlu0 %v2030
    %v2032 = vpop.xlane.xlu0 %2031
    %v2033 = vsel %vm183, %v1985, 0.0
    %2034 = vadd.xlane.f32.xlu0 %v2033
    %v2035 = vpop.xlane.xlu0 %2034
    %v2036 = vsel %vm183, %v1986, 0.0
    %2037 = vadd.xlane.f32.xlu0 %v2036
    %v2038 = vpop.xlane.xlu0 %2037
    %v2039 = vsel %vm183, %v1987, 0.0
    %2040 = vadd.xlane.f32.xlu0 %v2039
    %v2041 = vpop.xlane.xlu0 %2040
    %v2042 = vsel %vm183, %v1988, 0.0
    %2043 = vadd.xlane.f32.xlu0 %v2042
    %v2044 = vpop.xlane.xlu0 %2043
    %v2045 = vsel %vm183, %v1989, 0.0
    %2046 = vadd.xlane.f32.xlu0 %v2045
    %v2047 = vpop.xlane.xlu0 %2046
    %v2048 = vsel %vm183, %v1990, 0.0
    %2049 = vadd.xlane.f32.xlu0 %v2048
    %v2050 = vpop.xlane.xlu0 %2049
    %v2051 = vsel %vm183, %v1991, 0.0
    %2052 = vadd.xlane.f32.xlu0 %v2051
    %v2053 = vpop.xlane.xlu0 %2052
    %v2054 = vsel %vm183, %v1992, 0.0
    %2055 = vadd.xlane.f32.xlu0 %v2054
    %v2056 = vpop.xlane.xlu0 %2055
    %v2057 = vsel %vm183, %v1993, 0.0
    %2058 = vadd.xlane.f32.xlu0 %v2057
    %v2059 = vpop.xlane.xlu0 %2058
    %v2060 = vsel %vm183, %v1994, 0.0
    %2061 = vadd.xlane.f32.xlu0 %v2060
    %v2062 = vpop.xlane.xlu0 %2061
    %v2063 = vsel %vm183, %v1995, 0.0
    %2064 = vadd.xlane.f32.xlu0 %v2063
    %v2065 = vpop.xlane.xlu0 %2064
    %v2066 = vsel %vm183, %v1996, 0.0
    %2067 = vadd.xlane.f32.xlu0 %v2066
    %v2068 = vpop.xlane.xlu0 %2067
    %v2069 = vsel %vm183, %v1997, 0.0
    %2070 = vadd.xlane.f32.xlu0 %v2069
    %v2071 = vpop.xlane.xlu0 %2070
    %v2072 = vsel %vm183, %v1998, 0.0
    %2073 = vadd.xlane.f32.xlu0 %v2072
    %v2074 = vpop.xlane.xlu0 %2073
    %v2075 = vsel %vm183, %v1999, 0.0
    %2076 = vadd.xlane.f32.xlu0 %v2075
    %v2077 = vpop.xlane.xlu0 %2076
    %v2078 = vsel %vm183, %v2000, 0.0
    %2079 = vadd.xlane.f32.xlu0 %v2078
    %v2080 = vpop.xlane.xlu0 %2079
    %v2081 = vsel %vm183, %v2001, 0.0
    %2082 = vadd.xlane.f32.xlu0 %v2081
    %v2083 = vpop.xlane.xlu0 %2082
    %v2084 = vsel %vm183, %v2002, 0.0
    %2085 = vadd.xlane.f32.xlu0 %v2084
    %v2086 = vpop.xlane.xlu0 %2085
    %v2087 = vsel %vm183, %v2003, 0.0
    %2088 = vadd.xlane.f32.xlu0 %v2087
    %v2089 = vpop.xlane.xlu0 %2088
    %v2090 = vsel %vm183, %v2004, 0.0
    %2091 = vadd.xlane.f32.xlu0 %v2090
    %v2092 = vpop.xlane.xlu0 %2091
    %v2093 = vsel %vm183, %v2005, 0.0
    %2094 = vadd.xlane.f32.xlu0 %v2093
    %v2095 = vpop.xlane.xlu0 %2094
    %v2096 = vsel %vm183, %v2006, 0.0
    %2097 = vadd.xlane.f32.xlu0 %v2096
    %v2098 = vpop.xlane.xlu0 %2097
    %v2099 = vsel %vm183, %v2007, 0.0
    %2100 = vadd.xlane.f32.xlu0 %v2099
    %v2101 = vpop.xlane.xlu0 %2100
    %v2102 = vsel %vm183, %v2008, 0.0
    %2103 = vadd.xlane.f32.xlu0 %v2102
    %v2104 = vpop.xlane.xlu0 %2103
    %v2105 = vperm.slane %v43, 6
    %v2106 = vadd.f32 %v2011, %v2105
    %v2107 = vadd.f32 %v2014, %v2105
    %v2108 = vadd.f32 %v2017, %v2105
    %v2109 = vadd.f32 %v2020, %v2105
    %v2110 = vadd.f32 %v2023, %v2105
    %v2111 = vadd.f32 %v2026, %v2105
    %v2112 = vadd.f32 %v2029, %v2105
    %v2113 = vadd.f32 %v2032, %v2105
    %v2114 = vadd.f32 %v2035, %v2105
    %v2115 = vadd.f32 %v2038, %v2105
    %v2116 = vadd.f32 %v2041, %v2105
    %v2117 = vadd.f32 %v2044, %v2105
    %v2118 = vadd.f32 %v2047, %v2105
    %v2119 = vadd.f32 %v2050, %v2105
    %v2120 = vadd.f32 %v2053, %v2105
    %v2121 = vadd.f32 %v2056, %v2105
    %v2122 = vadd.f32 %v2059, %v2105
    %v2123 = vadd.f32 %v2062, %v2105
    %v2124 = vadd.f32 %v2065, %v2105
    %v2125 = vadd.f32 %v2068, %v2105
    %v2126 = vadd.f32 %v2071, %v2105
    %v2127 = vadd.f32 %v2074, %v2105
    %v2128 = vadd.f32 %v2077, %v2105
    %v2129 = vadd.f32 %v2080, %v2105
    %v2130 = vadd.f32 %v2083, %v2105
    %v2131 = vadd.f32 %v2086, %v2105
    %v2132 = vadd.f32 %v2089, %v2105
    %v2133 = vadd.f32 %v2092, %v2105
    %v2134 = vadd.f32 %v2095, %v2105
    %v2135 = vadd.f32 %v2098, %v2105
    %v2136 = vadd.f32 %v2101, %v2105
    %v2137 = vadd.f32 %v2104, %v2105
    %v2138 = vand.u32 2147483647, %v2106
    %v2139 = vand.u32 2147483647, %v2107
    %v2140 = vand.u32 2147483647, %v2108
    %v2141 = vand.u32 2147483647, %v2109
    %v2142 = vand.u32 2147483647, %v2110
    %v2143 = vand.u32 2147483647, %v2111
    %v2144 = vand.u32 2147483647, %v2112
    %v2145 = vand.u32 2147483647, %v2113
    %v2146 = vand.u32 2147483647, %v2114
    %v2147 = vand.u32 2147483647, %v2115
    %v2148 = vand.u32 2147483647, %v2116
    %v2149 = vand.u32 2147483647, %v2117
    %v2150 = vand.u32 2147483647, %v2118
    %v2151 = vand.u32 2147483647, %v2119
    %v2152 = vand.u32 2147483647, %v2120
    %v2153 = vand.u32 2147483647, %v2121
    %v2154 = vand.u32 2147483647, %v2122
    %v2155 = vand.u32 2147483647, %v2123
    %v2156 = vand.u32 2147483647, %v2124
    %v2157 = vand.u32 2147483647, %v2125
    %v2158 = vand.u32 2147483647, %v2126
    %v2159 = vand.u32 2147483647, %v2127
    %v2160 = vand.u32 2147483647, %v2128
    %v2161 = vand.u32 2147483647, %v2129
    %v2162 = vand.u32 2147483647, %v2130
    %v2163 = vand.u32 2147483647, %v2131
    %v2164 = vand.u32 2147483647, %v2132
    %v2165 = vand.u32 2147483647, %v2133
    %v2166 = vand.u32 2147483647, %v2134
    %v2167 = vand.u32 2147483647, %v2135
    %v2168 = vand.u32 2147483647, %v2136
    %v2169 = vand.u32 2147483647, %v2137
    %v2170 = vsub.f32 0.0, %v2138
    %v2171 = vsub.f32 0.0, %v2139
    %v2172 = vsub.f32 0.0, %v2140
    %v2173 = vsub.f32 0.0, %v2141
    %v2174 = vsub.f32 0.0, %v2142
    %v2175 = vsub.f32 0.0, %v2143
    %v2176 = vsub.f32 0.0, %v2144
    %v2177 = vsub.f32 0.0, %v2145
    %v2178 = vsub.f32 0.0, %v2146
    %v2179 = vsub.f32 0.0, %v2147
    %v2180 = vsub.f32 0.0, %v2148
    %v2181 = vsub.f32 0.0, %v2149
    %v2182 = vsub.f32 0.0, %v2150
    %v2183 = vsub.f32 0.0, %v2151
    %v2184 = vsub.f32 0.0, %v2152
    %v2185 = vsub.f32 0.0, %v2153
    %v2186 = vsub.f32 0.0, %v2154
    %v2187 = vsub.f32 0.0, %v2155
    %v2188 = vsub.f32 0.0, %v2156
    %v2189 = vsub.f32 0.0, %v2157
    %v2190 = vsub.f32 0.0, %v2158
    %v2191 = vsub.f32 0.0, %v2159
    %v2192 = vsub.f32 0.0, %v2160
    %v2193 = vsub.f32 0.0, %v2161
    %v2194 = vsub.f32 0.0, %v2162
    %v2195 = vsub.f32 0.0, %v2163
    %v2196 = vsub.f32 0.0, %v2164
    %v2197 = vsub.f32 0.0, %v2165
    %v2198 = vsub.f32 0.0, %v2166
    %v2199 = vsub.f32 0.0, %v2167
    %v2200 = vsub.f32 0.0, %v2168
    %v2201 = vsub.f32 0.0, %v2169
    %v2202 = vmul.f32 %v2170, 1.442695
    %v2203 = vpow.pop %v2202
    %v2204 = vmul.f32 %v2171, 1.442695
    %v2205 = vpow.pop %v2204
    %v2206 = vmul.f32 %v2172, 1.442695
    %v2207 = vpow.pop %v2206
    %v2208 = vmul.f32 %v2173, 1.442695
    %v2209 = vpow.pop %v2208
    %v2210 = vmul.f32 %v2174, 1.442695
    %v2211 = vpow.pop %v2210
    %v2212 = vmul.f32 %v2175, 1.442695
    %v2213 = vpow.pop %v2212
    %v2214 = vmul.f32 %v2176, 1.442695
    %v2215 = vpow.pop %v2214
    %v2216 = vmul.f32 %v2177, 1.442695
    %v2217 = vpow.pop %v2216
    %v2218 = vmul.f32 %v2178, 1.442695
    %v2219 = vpow.pop %v2218
    %v2220 = vmul.f32 %v2179, 1.442695
    %v2221 = vpow.pop %v2220
    %v2222 = vmul.f32 %v2180, 1.442695
    %v2223 = vpow.pop %v2222
    %v2224 = vmul.f32 %v2181, 1.442695
    %v2225 = vpow.pop %v2224
    %v2226 = vmul.f32 %v2182, 1.442695
    %v2227 = vpow.pop %v2226
    %v2228 = vmul.f32 %v2183, 1.442695
    %v2229 = vpow.pop %v2228
    %v2230 = vmul.f32 %v2184, 1.442695
    %v2231 = vpow.pop %v2230
    %v2232 = vmul.f32 %v2185, 1.442695
    %v2233 = vpow.pop %v2232
    %v2234 = vmul.f32 %v2186, 1.442695
    %v2235 = vpow.pop %v2234
    %v2236 = vmul.f32 %v2187, 1.442695
    %v2237 = vpow.pop %v2236
    %v2238 = vmul.f32 %v2188, 1.442695
    %v2239 = vpow.pop %v2238
    %v2240 = vmul.f32 %v2189, 1.442695
    %v2241 = vpow.pop %v2240
    %v2242 = vmul.f32 %v2190, 1.442695
    %v2243 = vpow.pop %v2242
    %v2244 = vmul.f32 %v2191, 1.442695
    %v2245 = vpow.pop %v2244
    %v2246 = vmul.f32 %v2192, 1.442695
    %v2247 = vpow.pop %v2246
    %v2248 = vmul.f32 %v2193, 1.442695
    %v2249 = vpow.pop %v2248
    %v2250 = vmul.f32 %v2194, 1.442695
    %v2251 = vpow.pop %v2250
    %v2252 = vmul.f32 %v2195, 1.442695
    %v2253 = vpow.pop %v2252
    %v2254 = vmul.f32 %v2196, 1.442695
    %v2255 = vpow.pop %v2254
    %v2256 = vmul.f32 %v2197, 1.442695
    %v2257 = vpow.pop %v2256
    %v2258 = vmul.f32 %v2198, 1.442695
    %v2259 = vpow.pop %v2258
    %v2260 = vmul.f32 %v2199, 1.442695
    %v2261 = vpow.pop %v2260
    %v2262 = vmul.f32 %v2200, 1.442695
    %v2263 = vpow.pop %v2262
    %v2264 = vmul.f32 %v2201, 1.442695
    %v2265 = vpow.pop %v2264
    %v2266 = vadd.f32 %v2203, 1.0
    %v2267 = vadd.f32 %v2205, 1.0
    %v2268 = vadd.f32 %v2207, 1.0
    %v2269 = vadd.f32 %v2209, 1.0
    %v2270 = vadd.f32 %v2211, 1.0
    %v2271 = vadd.f32 %v2213, 1.0
    %v2272 = vadd.f32 %v2215, 1.0
    %v2273 = vadd.f32 %v2217, 1.0
    %v2274 = vadd.f32 %v2219, 1.0
    %v2275 = vadd.f32 %v2221, 1.0
    %v2276 = vadd.f32 %v2223, 1.0
    %v2277 = vadd.f32 %v2225, 1.0
    %v2278 = vadd.f32 %v2227, 1.0
    %v2279 = vadd.f32 %v2229, 1.0
    %v2280 = vadd.f32 %v2231, 1.0
    %v2281 = vadd.f32 %v2233, 1.0
    %v2282 = vadd.f32 %v2235, 1.0
    %v2283 = vadd.f32 %v2237, 1.0
    %v2284 = vadd.f32 %v2239, 1.0
    %v2285 = vadd.f32 %v2241, 1.0
    %v2286 = vadd.f32 %v2243, 1.0
    %v2287 = vadd.f32 %v2245, 1.0
    %v2288 = vadd.f32 %v2247, 1.0
    %v2289 = vadd.f32 %v2249, 1.0
    %v2290 = vadd.f32 %v2251, 1.0
    %v2291 = vadd.f32 %v2253, 1.0
    %v2292 = vadd.f32 %v2255, 1.0
    %v2293 = vadd.f32 %v2257, 1.0
    %v2294 = vadd.f32 %v2259, 1.0
    %v2295 = vadd.f32 %v2261, 1.0
    %v2296 = vadd.f32 %v2263, 1.0
    %v2297 = vadd.f32 %v2265, 1.0
    %v2298 = vrcp.pop %v2266
    %v2299 = vrcp.pop %v2267
    %v2300 = vrcp.pop %v2268
    %v2301 = vrcp.pop %v2269
    %v2302 = vrcp.pop %v2270
    %v2303 = vrcp.pop %v2271
    %v2304 = vrcp.pop %v2272
    %v2305 = vrcp.pop %v2273
    %v2306 = vrcp.pop %v2274
    %v2307 = vrcp.pop %v2275
    %v2308 = vrcp.pop %v2276
    %v2309 = vrcp.pop %v2277
    %v2310 = vrcp.pop %v2278
    %v2311 = vrcp.pop %v2279
    %v2312 = vrcp.pop %v2280
    %v2313 = vrcp.pop %v2281
    %v2314 = vrcp.pop %v2282
    %v2315 = vrcp.pop %v2283
    %v2316 = vrcp.pop %v2284
    %v2317 = vrcp.pop %v2285
    %v2318 = vrcp.pop %v2286
    %v2319 = vrcp.pop %v2287
    %v2320 = vrcp.pop %v2288
    %v2321 = vrcp.pop %v2289
    %v2322 = vrcp.pop %v2290
    %v2323 = vrcp.pop %v2291
    %v2324 = vrcp.pop %v2292
    %v2325 = vrcp.pop %v2293
    %v2326 = vrcp.pop %v2294
    %v2327 = vrcp.pop %v2295
    %v2328 = vrcp.pop %v2296
    %v2329 = vrcp.pop %v2297
    %vm2330 = vcmp.ge.f32.partialorder %v2106, 0.0
    %vm2331 = vcmp.ge.f32.partialorder %v2107, 0.0
    %vm2332 = vcmp.ge.f32.partialorder %v2108, 0.0
    %vm2333 = vcmp.ge.f32.partialorder %v2109, 0.0
    %vm2334 = vcmp.ge.f32.partialorder %v2110, 0.0
    %vm2335 = vcmp.ge.f32.partialorder %v2111, 0.0
    %vm2336 = vcmp.ge.f32.partialorder %v2112, 0.0
    %vm2337 = vcmp.ge.f32.partialorder %v2113, 0.0
    %vm2338 = vcmp.ge.f32.partialorder %v2114, 0.0
    %vm2339 = vcmp.ge.f32.partialorder %v2115, 0.0
    %vm2340 = vcmp.ge.f32.partialorder %v2116, 0.0
    %vm2341 = vcmp.ge.f32.partialorder %v2117, 0.0
    %vm2342 = vcmp.ge.f32.partialorder %v2118, 0.0
    %vm2343 = vcmp.ge.f32.partialorder %v2119, 0.0
    %vm2344 = vcmp.ge.f32.partialorder %v2120, 0.0
    %vm2345 = vcmp.ge.f32.partialorder %v2121, 0.0
    %vm2346 = vcmp.ge.f32.partialorder %v2122, 0.0
    %vm2347 = vcmp.ge.f32.partialorder %v2123, 0.0
    %vm2348 = vcmp.ge.f32.partialorder %v2124, 0.0
    %vm2349 = vcmp.ge.f32.partialorder %v2125, 0.0
    %vm2350 = vcmp.ge.f32.partialorder %v2126, 0.0
    %vm2351 = vcmp.ge.f32.partialorder %v2127, 0.0
    %vm2352 = vcmp.ge.f32.partialorder %v2128, 0.0
    %vm2353 = vcmp.ge.f32.partialorder %v2129, 0.0
    %vm2354 = vcmp.ge.f32.partialorder %v2130, 0.0
    %vm2355 = vcmp.ge.f32.partialorder %v2131, 0.0
    %vm2356 = vcmp.ge.f32.partialorder %v2132, 0.0
    %vm2357 = vcmp.ge.f32.partialorder %v2133, 0.0
    %vm2358 = vcmp.ge.f32.partialorder %v2134, 0.0
    %vm2359 = vcmp.ge.f32.partialorder %v2135, 0.0
    %vm2360 = vcmp.ge.f32.partialorder %v2136, 0.0
    %vm2361 = vcmp.ge.f32.partialorder %v2137, 0.0
    %v2362 = vsub.f32 1.0, %v2298
    %v2363 = vsub.f32 1.0, %v2299
    %v2364 = vsub.f32 1.0, %v2300
    %v2365 = vsub.f32 1.0, %v2301
    %v2366 = vsub.f32 1.0, %v2302
    %v2367 = vsub.f32 1.0, %v2303
    %v2368 = vsub.f32 1.0, %v2304
    %v2369 = vsub.f32 1.0, %v2305
    %v2370 = vsub.f32 1.0, %v2306
    %v2371 = vsub.f32 1.0, %v2307
    %v2372 = vsub.f32 1.0, %v2308
    %v2373 = vsub.f32 1.0, %v2309
    %v2374 = vsub.f32 1.0, %v2310
    %v2375 = vsub.f32 1.0, %v2311
    %v2376 = vsub.f32 1.0, %v2312
    %v2377 = vsub.f32 1.0, %v2313
    %v2378 = vsub.f32 1.0, %v2314
    %v2379 = vsub.f32 1.0, %v2315
    %v2380 = vsub.f32 1.0, %v2316
    %v2381 = vsub.f32 1.0, %v2317
    %v2382 = vsub.f32 1.0, %v2318
    %v2383 = vsub.f32 1.0, %v2319
    %v2384 = vsub.f32 1.0, %v2320
    %v2385 = vsub.f32 1.0, %v2321
    %v2386 = vsub.f32 1.0, %v2322
    %v2387 = vsub.f32 1.0, %v2323
    %v2388 = vsub.f32 1.0, %v2324
    %v2389 = vsub.f32 1.0, %v2325
    %v2390 = vsub.f32 1.0, %v2326
    %v2391 = vsub.f32 1.0, %v2327
    %v2392 = vsub.f32 1.0, %v2328
    %v2393 = vsub.f32 1.0, %v2329
    %v2394 = vsel %vm2330, %v2298, %v2362
    %v2395 = vsel %vm2331, %v2299, %v2363
    %v2396 = vsel %vm2332, %v2300, %v2364
    %v2397 = vsel %vm2333, %v2301, %v2365
    %v2398 = vsel %vm2334, %v2302, %v2366
    %v2399 = vsel %vm2335, %v2303, %v2367
    %v2400 = vsel %vm2336, %v2304, %v2368
    %v2401 = vsel %vm2337, %v2305, %v2369
    %v2402 = vsel %vm2338, %v2306, %v2370
    %v2403 = vsel %vm2339, %v2307, %v2371
    %v2404 = vsel %vm2340, %v2308, %v2372
    %v2405 = vsel %vm2341, %v2309, %v2373
    %v2406 = vsel %vm2342, %v2310, %v2374
    %v2407 = vsel %vm2343, %v2311, %v2375
    %v2408 = vsel %vm2344, %v2312, %v2376
    %v2409 = vsel %vm2345, %v2313, %v2377
    %v2410 = vsel %vm2346, %v2314, %v2378
    %v2411 = vsel %vm2347, %v2315, %v2379
    %v2412 = vsel %vm2348, %v2316, %v2380
    %v2413 = vsel %vm2349, %v2317, %v2381
    %v2414 = vsel %vm2350, %v2318, %v2382
    %v2415 = vsel %vm2351, %v2319, %v2383
    %v2416 = vsel %vm2352, %v2320, %v2384
    %v2417 = vsel %vm2353, %v2321, %v2385
    %v2418 = vsel %vm2354, %v2322, %v2386
    %v2419 = vsel %vm2355, %v2323, %v2387
    %v2420 = vsel %vm2356, %v2324, %v2388
    %v2421 = vsel %vm2357, %v2325, %v2389
    %v2422 = vsel %vm2358, %v2326, %v2390
    %v2423 = vsel %vm2359, %v2327, %v2391
    %v2424 = vsel %vm2360, %v2328, %v2392
    %v2425 = vsel %vm2361, %v2329, %v2393
    %2458 = vrot.lane.b32.xlu0 %v1944, 1
    %v2459 = vpop.permute.xlu0 %2458
    %2460 = vrot.lane.b32.xlu0 %v1945, 1
    %v2461 = vpop.permute.xlu0 %2460
    %2462 = vrot.lane.b32.xlu0 %v1946, 1
    %v2463 = vpop.permute.xlu0 %2462
    %2464 = vrot.lane.b32.xlu0 %v1947, 1
    %v2465 = vpop.permute.xlu0 %2464
    %2466 = vrot.lane.b32.xlu0 %v1948, 1
    %v2467 = vpop.permute.xlu0 %2466
    %2468 = vrot.lane.b32.xlu0 %v1949, 1
    %v2469 = vpop.permute.xlu0 %2468
    %2470 = vrot.lane.b32.xlu0 %v1950, 1
    %v2471 = vpop.permute.xlu0 %2470
    %2472 = vrot.lane.b32.xlu0 %v1951, 1
    %v2473 = vpop.permute.xlu0 %2472
    %2474 = vrot.lane.b32.xlu0 %v1952, 1
    %v2475 = vpop.permute.xlu0 %2474
    %2476 = vrot.lane.b32.xlu0 %v1953, 1
    %v2477 = vpop.permute.xlu0 %2476
    %2478 = vrot.lane.b32.xlu0 %v1954, 1
    %v2479 = vpop.permute.xlu0 %2478
    %2480 = vrot.lane.b32.xlu0 %v1955, 1
    %v2481 = vpop.permute.xlu0 %2480
    %2482 = vrot.lane.b32.xlu0 %v1956, 1
    %v2483 = vpop.permute.xlu0 %2482
    %2484 = vrot.lane.b32.xlu0 %v1957, 1
    %v2485 = vpop.permute.xlu0 %2484
    %2486 = vrot.lane.b32.xlu0 %v1958, 1
    %v2487 = vpop.permute.xlu0 %2486
    %2488 = vrot.lane.b32.xlu0 %v1959, 1
    %v2489 = vpop.permute.xlu0 %2488
    %2490 = vrot.lane.b32.xlu0 %v1960, 1
    %v2491 = vpop.permute.xlu0 %2490
    %2492 = vrot.lane.b32.xlu0 %v1961, 1
    %v2493 = vpop.permute.xlu0 %2492
    %2494 = vrot.lane.b32.xlu0 %v1962, 1
    %v2495 = vpop.permute.xlu0 %2494
    %2496 = vrot.lane.b32.xlu0 %v1963, 1
    %v2497 = vpop.permute.xlu0 %2496
    %2498 = vrot.lane.b32.xlu0 %v1964, 1
    %v2499 = vpop.permute.xlu0 %2498
    %2500 = vrot.lane.b32.xlu0 %v1965, 1
    %v2501 = vpop.permute.xlu0 %2500
    %2502 = vrot.lane.b32.xlu0 %v1966, 1
    %v2503 = vpop.permute.xlu0 %2502
    %2504 = vrot.lane.b32.xlu0 %v1967, 1
    %v2505 = vpop.permute.xlu0 %2504
    %2506 = vrot.lane.b32.xlu0 %v1968, 1
    %v2507 = vpop.permute.xlu0 %2506
    %2508 = vrot.lane.b32.xlu0 %v1969, 1
    %v2509 = vpop.permute.xlu0 %2508
    %2510 = vrot.lane.b32.xlu0 %v1970, 1
    %v2511 = vpop.permute.xlu0 %2510
    %2512 = vrot.lane.b32.xlu0 %v1971, 1
    %v2513 = vpop.permute.xlu0 %2512
    %2514 = vrot.lane.b32.xlu0 %v1972, 1
    %v2515 = vpop.permute.xlu0 %2514
    %2516 = vrot.lane.b32.xlu0 %v1973, 1
    %v2517 = vpop.permute.xlu0 %2516
    %2518 = vrot.lane.b32.xlu0 %v1974, 1
    %v2519 = vpop.permute.xlu0 %2518
    %2520 = vrot.lane.b32.xlu0 %v1975, 1
    %v2521 = vpop.permute.xlu0 %2520
    %vm2554 = vcmask 7168
    %v2555 = vsel %vm2554, %v2394, %v2459
    %v2556 = vsel %vm2554, %v2395, %v2461
    %v2557 = vsel %vm2554, %v2396, %v2463
    %v2558 = vsel %vm2554, %v2397, %v2465
    %v2559 = vsel %vm2554, %v2398, %v2467
    %v2560 = vsel %vm2554, %v2399, %v2469
    %v2561 = vsel %vm2554, %v2400, %v2471
    %v2562 = vsel %vm2554, %v2401, %v2473
    %v2563 = vsel %vm2554, %v2402, %v2475
    %v2564 = vsel %vm2554, %v2403, %v2477
    %v2565 = vsel %vm2554, %v2404, %v2479
    %v2566 = vsel %vm2554, %v2405, %v2481
    %v2567 = vsel %vm2554, %v2406, %v2483
    %v2568 = vsel %vm2554, %v2407, %v2485
    %v2569 = vsel %vm2554, %v2408, %v2487
    %v2570 = vsel %vm2554, %v2409, %v2489
    %v2571 = vsel %vm2554, %v2410, %v2491
    %v2572 = vsel %vm2554, %v2411, %v2493
    %v2573 = vsel %vm2554, %v2412, %v2495
    %v2574 = vsel %vm2554, %v2413, %v2497
    %v2575 = vsel %vm2554, %v2414, %v2499
    %v2576 = vsel %vm2554, %v2415, %v2501
    %v2577 = vsel %vm2554, %v2416, %v2503
    %v2578 = vsel %vm2554, %v2417, %v2505
    %v2579 = vsel %vm2554, %v2418, %v2507
    %v2580 = vsel %vm2554, %v2419, %v2509
    %v2581 = vsel %vm2554, %v2420, %v2511
    %v2582 = vsel %vm2554, %v2421, %v2513
    %v2583 = vsel %vm2554, %v2422, %v2515
    %v2584 = vsel %vm2554, %v2423, %v2517
    %v2585 = vsel %vm2554, %v2424, %v2519
    %v2586 = vsel %vm2554, %v2425, %v2521
    %vm2587 = vcmask 269312
    %v2588 = vsel %vm2587, %v2555, 0.0
    %v2589 = vsel %vm2587, %v2556, 0.0
    %v2590 = vsel %vm2587, %v2557, 0.0
    %v2591 = vsel %vm2587, %v2558, 0.0
    %v2592 = vsel %vm2587, %v2559, 0.0
    %v2593 = vsel %vm2587, %v2560, 0.0
    %v2594 = vsel %vm2587, %v2561, 0.0
    %v2595 = vsel %vm2587, %v2562, 0.0
    %v2596 = vsel %vm2587, %v2563, 0.0
    %v2597 = vsel %vm2587, %v2564, 0.0
    %v2598 = vsel %vm2587, %v2565, 0.0
    %v2599 = vsel %vm2587, %v2566, 0.0
    %v2600 = vsel %vm2587, %v2567, 0.0
    %v2601 = vsel %vm2587, %v2568, 0.0
    %v2602 = vsel %vm2587, %v2569, 0.0
    %v2603 = vsel %vm2587, %v2570, 0.0
    %v2604 = vsel %vm2587, %v2571, 0.0
    %v2605 = vsel %vm2587, %v2572, 0.0
    %v2606 = vsel %vm2587, %v2573, 0.0
    %v2607 = vsel %vm2587, %v2574, 0.0
    %v2608 = vsel %vm2587, %v2575, 0.0
    %v2609 = vsel %vm2587, %v2576, 0.0
    %v2610 = vsel %vm2587, %v2577, 0.0
    %v2611 = vsel %vm2587, %v2578, 0.0
    %v2612 = vsel %vm2587, %v2579, 0.0
    %v2613 = vsel %vm2587, %v2580, 0.0
    %v2614 = vsel %vm2587, %v2581, 0.0
    %v2615 = vsel %vm2587, %v2582, 0.0
    %v2616 = vsel %vm2587, %v2583, 0.0
    %v2617 = vsel %vm2587, %v2584, 0.0
    %v2618 = vsel %vm2587, %v2585, 0.0
    %v2619 = vsel %vm2587, %v2586, 0.0
    %2620 = vst [vmem:[%s7] sm:$0xff] %v2588
    %2621 = vst [vmem:[%s7 + $0x8] sm:$0xff] %v2589
    %2622 = vst [vmem:[%s7 + $0x10] sm:$0xff] %v2590
    %2623 = vst [vmem:[%s7 + $0x18] sm:$0xff] %v2591
    %2624 = vst [vmem:[%s7 + $0x20] sm:$0xff] %v2592
    %2625 = vst [vmem:[%s7 + $0x28] sm:$0xff] %v2593
    %2626 = vst [vmem:[%s7 + $0x30] sm:$0xff] %v2594
    %2627 = vst [vmem:[%s7 + $0x38] sm:$0xff] %v2595
    %2628 = vst [vmem:[%s7 + $0x40] sm:$0xff] %v2596
    %2629 = vst [vmem:[%s7 + $0x48] sm:$0xff] %v2597
    %2630 = vst [vmem:[%s7 + $0x50] sm:$0xff] %v2598
    %2631 = vst [vmem:[%s7 + $0x58] sm:$0xff] %v2599
    %2632 = vst [vmem:[%s7 + $0x60] sm:$0xff] %v2600
    %2633 = vst [vmem:[%s7 + $0x68] sm:$0xff] %v2601
    %2634 = vst [vmem:[%s7 + $0x70] sm:$0xff] %v2602
    %2635 = vst [vmem:[%s7 + $0x78] sm:$0xff] %v2603
    %2636 = vst [vmem:[%s7 + $0x80] sm:$0xff] %v2604
    %2637 = vst [vmem:[%s7 + $0x88] sm:$0xff] %v2605
    %2638 = vst [vmem:[%s7 + $0x90] sm:$0xff] %v2606
    %2639 = vst [vmem:[%s7 + $0x98] sm:$0xff] %v2607
    %2640 = vst [vmem:[%s7 + $0xa0] sm:$0xff] %v2608
    %2641 = vst [vmem:[%s7 + $0xa8] sm:$0xff] %v2609
    %2642 = vst [vmem:[%s7 + $0xb0] sm:$0xff] %v2610
    %2643 = vst [vmem:[%s7 + $0xb8] sm:$0xff] %v2611
    %2644 = vst [vmem:[%s7 + $0xc0] sm:$0xff] %v2612
    %2645 = vst [vmem:[%s7 + $0xc8] sm:$0xff] %v2613
    %2646 = vst [vmem:[%s7 + $0xd0] sm:$0xff] %v2614
    %2647 = vst [vmem:[%s7 + $0xd8] sm:$0xff] %v2615
    %2648 = vst [vmem:[%s7 + $0xe0] sm:$0xff] %v2616
    %2649 = vst [vmem:[%s7 + $0xe8] sm:$0xff] %v2617
    %2650 = vst [vmem:[%s7 + $0xf0] sm:$0xff] %v2618
    %2651 = vst [vmem:[%s7 + $0xf8] sm:$0xff] %v2619
    // Predicated region
    $region34: #{_forward_impl.1} parent=1 // pred_check
      _
    $region35: #{_forward_impl.1} parent=1 // pred_check_branch
      %2653 = sbr.rel (0) target = $region37
    $region36: #{_forward_impl.1} parent=1 // pred_region
      _
    $region37: #{_forward_impl.1} parent=1 // pred_fallthru
      _
    // Predicated region
    $region38: #{_forward_impl.1} parent=1 // pred_check
      _
    $region39: #{_forward_impl.1} parent=1 // pred_check_branch
      %2655 = sbr.rel (0) target = $region41
    $region40: #{_forward_impl.1} parent=1 // pred_region
      _
    $region41: #{_forward_impl.1} parent=1 // pred_fallthru
      _
    %2656 = vsyncpa [#allocation3], 1

</llo_original>
